<compile_context>
chip_gen: v7x
topology: tpu7x:2x2x1
jax: 0.10.0
libtpu: 0.0.40
codegen_flags: <defaults>
</compile_context>

<pallas_src>
import functools

import jax
import jax.numpy as jnp
from jax.experimental import pallas as pl
from jax.experimental.pallas import tpu as pltpu


def _mlp_kernel(x_ref,
                w1_ref, b1_ref,
                w2_ref, b2_ref,
                w3_ref, b3_ref,
                w4_ref, b4_ref,
                w5_ref, b5_ref,
                w6_ref, b6_ref,
                o_ref):
    """Fused 6-layer MLP in feature-major layout (batch on the lane axis)."""
    h = x_ref[...]                      # (F, bt) float32

    def dense_relu(h, w_ref, b_ref):
        # W (out, in) bf16 @ h (in, bt) bf16 -> (out, bt) with f32 MXU accum.
        # Bias (out, 1) broadcast across lanes + ReLU in f32 on the VPU.
        y = jnp.dot(w_ref[...], h.astype(jnp.bfloat16),
                    preferred_element_type=jnp.float32)
        return jnp.maximum(y + b_ref[...], 0.0)

    h = dense_relu(h, w1_ref, b1_ref)   # (64, bt)
    h = dense_relu(h, w2_ref, b2_ref)   # (64, bt)
    h = dense_relu(h, w3_ref, b3_ref)   # (32, bt)
    h = dense_relu(h, w4_ref, b4_ref)   # (32, bt)
    h = dense_relu(h, w5_ref, b5_ref)   # (16, bt)

    # Final Linear(16, 1): f32 VPU multiply + 16-row sublane reduce -> (1, bt).
    # Avoids an MXU matmul with N=1 and keeps the store lane-dense.
    y = jnp.sum(h * w6_ref[...], axis=0, keepdims=True) + b6_ref[...]

    o_ref[...] = y.astype(o_ref.dtype)


def _round_up(n, m):
    return ((n + m - 1) // m) * m


def _num_batch_tiles():
    """2 grid steps on multi-TensorCore chips (v7x) so the 'parallel' batch axis
    can be sharded across both cores; 1 step on single-TC v5e/v6e."""
    try:
        kind = jax.devices()[0].device_kind.lower()
    except Exception:
        return 1
    # TODO(synk): if plain "parallel" does not shard the axis across v7x cores,
    # switch that axis to pltpu.CORE_PARALLEL (needs a Mosaic-dump check).
    return 2 if "v7" in kind else 1


@functools.partial(jax.jit, static_argnames=("batch_tile",))
def qat_mlp_forward(x, params, batch_tile=None):
    """x: [B, F] float32; returns [B, 1] float32.

    params: tuple of (w, b) per layer, as produced by prepare_params():
      layers 1-5: w [out, in] bfloat16, b [out, 1] float32
      layer  6  : w [16, 1]   float32,  b [1, 1]   float32
    """
    B, F = x.shape

    if batch_tile is None:
        bt = _round_up(pl.cdiv(B, _num_batch_tiles()), 128)
    else:
        bt = _round_up(min(batch_tile, B), 128)
    # Anything up to bt ~ 8192 is fine VMEM-wise on every TPU generation
    # (x tile = F*bt*4 bytes x2 buffers, plus ~20 KiB of resident weights).

    # Feature-major: transpose once in the wrapper (layout plumbing, not
    # compute) so batch sits on the 128-lane axis inside the kernel.
    x_t = x.T                                    # (F, B)
    B_pad = _round_up(B, bt)
    if B_pad != B:
        # Padded columns compute garbage but every batch column is independent
        # and they are sliced off below. Do NOT rely on this if a cross-batch
        # reduction is ever added to the kernel.
        x_t = jnp.pad(x_t, ((0, 0), (0, B_pad - B)))

    in_specs = [pl.BlockSpec((F, bt), lambda i: (0, i))]
    flat_params = []
    for (w, b) in params:
        # Constant index maps: each weight/bias is DMA'd once and stays
        # VMEM-resident across the whole grid.
        in_specs.append(pl.BlockSpec(w.shape, lambda i: (0, 0)))
        in_specs.append(pl.BlockSpec(b.shape, lambda i: (0, 0)))
        flat_params.extend((w, b))

    # Advisory cost hint: ~2*B*9744 FLOP, ~B*F*4 + B*4 bytes + ~20 KiB weights.
    flops = 2 * B_pad * sum(int(w.shape[0]) * int(w.shape[1]) for w, _ in params)
    bytes_accessed = (x_t.size * x_t.dtype.itemsize + B_pad * 4
                      + sum(w.size * w.dtype.itemsize + b.size * b.dtype.itemsize
                            for w, b in params))
    cost = pl.CostEstimate(flops=flops, transcendentals=0,
                           bytes_accessed=bytes_accessed)

    out_t = pl.pallas_call(
        _mlp_kernel,
        out_shape=jax.ShapeDtypeStruct((1, B_pad), x.dtype),
        grid=(B_pad // bt,),
        in_specs=in_specs,
        out_specs=pl.BlockSpec((1, bt), lambda i: (0, i)),
        compiler_params=pltpu.CompilerParams(
            dimension_semantics=("parallel",)),
        cost_estimate=cost,
    )(x_t, *flat_params)                         # (1, B_pad), lane-dense stores

    return out_t[:, :B].T                        # (B, 1)


def init_params(key, input_size):
    """f32 params mirroring nn.Linear: W [out,in], b [out], U(-1/sqrt(fan_in), 1/sqrt(fan_in))."""
    dims = [input_size, 64, 64, 32, 32, 16, 1]
    params = []
    for li in range(6):
        fan_in, fan_out = dims[li], dims[li + 1]
        key, kw, kb = jax.random.split(key, 3)
        bound = 1.0 / float(jnp.sqrt(fan_in))
        w = jax.random.uniform(kw, (fan_out, fan_in), jnp.float32, -bound, bound)
        b = jax.random.uniform(kb, (fan_out,), jnp.float32, -bound, bound)
        params.append((w, b))
    return params


def prepare_params(float_params):
    """Repack nn.Linear params for the feature-major kernel.

    Layers 1-5: W kept row-major [out, in] and cast to bf16 (MXU input dtype);
                bias as an f32 [out, 1] column (broadcasts across lanes).
    Layer 6   : W as an f32 [16, 1] column for the VPU head; bias [1, 1] f32.
    """
    prepared = []
    n = len(float_params)
    for i, (w, b) in enumerate(float_params):
        if i < n - 1:
            prepared.append((jnp.asarray(w, jnp.bfloat16),
                             jnp.asarray(b.reshape(-1, 1), jnp.float32)))
        else:
            prepared.append((jnp.asarray(w.reshape(-1, 1), jnp.float32),
                             jnp.asarray(b.reshape(1, 1), jnp.float32)))
    return tuple(prepared)


def reference_forward_f32(x, float_params):
    """Pure-f32 reference matching the PyTorch float forward."""
    h = x
    for i, (w, b) in enumerate(float_params):
        h = h @ w.T + b
        if i < len(float_params) - 1:
            h = jnp.maximum(h, 0.0)
    return h


def reference_forward_bf16(x, kernel_params):
    """Reference mirroring the kernel's mixed precision and layout exactly."""
    h = x.T                                      # (F, B)
    for (w, b) in kernel_params[:-1]:
        y = jnp.dot(w, h.astype(jnp.bfloat16),
                    preferred_element_type=jnp.float32) + b
        h = jnp.maximum(y, 0.0)
    w6, b6 = kernel_params[-1]
    y = jnp.sum(h * w6, axis=0, keepdims=True) + b6
    return y.T                                   # (B, 1)


if __name__ == "__main__":
    INPUT_SIZE = 32
    BATCH = 1024

    key = jax.random.PRNGKey(0)
    key, kx = jax.random.split(key)
    x = jax.random.normal(kx, (BATCH, INPUT_SIZE), jnp.float32)

    float_params = init_params(key, INPUT_SIZE)
    kernel_params = prepare_params(float_params)

    out = qat_mlp_forward(x, kernel_params)
    out = jax.block_until_ready(out)
    assert out.shape == (BATCH, 1), out.shape

    # Tight check against the bf16-emulated reference (same math as kernel).
    ref_bf16 = reference_forward_bf16(x, kernel_params)
    assert jnp.allclose(out, ref_bf16, atol=1e-3, rtol=1e-3), \
        float(jnp.max(jnp.abs(out - ref_bf16)))

    # Loose check against the pure-f32 PyTorch semantics (bf16 MXU inputs are
    # an intentional precision change, not a bug).
    ref_f32 = reference_forward_f32(x, float_params)
    assert jnp.allclose(out, ref_f32, atol=5e-2, rtol=5e-2), \
        float(jnp.max(jnp.abs(out - ref_f32)))

    print("KERNEL_OK")
</pallas_src>

<mosaic_0001>
module attributes {stable_mosaic.version = 11 : i64} {
  func.func @_mlp_kernel(%arg0: i32, %arg1: memref<32x1024xf32, #tpu.memory_space<vmem>>, %arg2: memref<64x32xbf16, #tpu.memory_space<vmem>>, %arg3: memref<64x1xf32, #tpu.memory_space<vmem>>, %arg4: memref<64x64xbf16, #tpu.memory_space<vmem>>, %arg5: memref<64x1xf32, #tpu.memory_space<vmem>>, %arg6: memref<32x64xbf16, #tpu.memory_space<vmem>>, %arg7: memref<32x1xf32, #tpu.memory_space<vmem>>, %arg8: memref<32x32xbf16, #tpu.memory_space<vmem>>, %arg9: memref<32x1xf32, #tpu.memory_space<vmem>>, %arg10: memref<16x32xbf16, #tpu.memory_space<vmem>>, %arg11: memref<16x1xf32, #tpu.memory_space<vmem>>, %arg12: memref<16x1xf32, #tpu.memory_space<vmem>>, %arg13: memref<1x1xf32, #tpu.memory_space<vmem>>, %arg14: memref<1x1024xf32, #tpu.memory_space<vmem>>) attributes {dimension_semantics = [#tpu.dimension_semantics<parallel>], iteration_bounds = array<i64: 1>, scalar_prefetch = 0 : i64, scratch_operands = 0 : i64, tpu.core_type = #tpu.core_type<tc>, window_params = [{transform_indices = @transform_0, window_bounds = array<i64: 32, 1024>}, {pipeline_mode = #tpu.pipeline_mode<synchronous>, transform_indices = @transform_1, window_bounds = array<i64: 64, 32>}, {pipeline_mode = #tpu.pipeline_mode<synchronous>, transform_indices = @transform_2, window_bounds = array<i64: 64, 1>}, {pipeline_mode = #tpu.pipeline_mode<synchronous>, transform_indices = @transform_3, window_bounds = array<i64: 64, 64>}, {pipeline_mode = #tpu.pipeline_mode<synchronous>, transform_indices = @transform_4, window_bounds = array<i64: 64, 1>}, {pipeline_mode = #tpu.pipeline_mode<synchronous>, transform_indices = @transform_5, window_bounds = array<i64: 32, 64>}, {pipeline_mode = #tpu.pipeline_mode<synchronous>, transform_indices = @transform_6, window_bounds = array<i64: 32, 1>}, {pipeline_mode = #tpu.pipeline_mode<synchronous>, transform_indices = @transform_7, window_bounds = array<i64: 32, 32>}, {pipeline_mode = #tpu.pipeline_mode<synchronous>, transform_indices = @transform_8, window_bounds = array<i64: 32, 1>}, {pipeline_mode = #tpu.pipeline_mode<synchronous>, transform_indices = @transform_9, window_bounds = array<i64: 16, 32>}, {pipeline_mode = #tpu.pipeline_mode<synchronous>, transform_indices = @transform_10, window_bounds = array<i64: 16, 1>}, {pipeline_mode = #tpu.pipeline_mode<synchronous>, transform_indices = @transform_11, window_bounds = array<i64: 16, 1>}, {pipeline_mode = #tpu.pipeline_mode<synchronous>, transform_indices = @transform_12, window_bounds = array<i64: 1, 1>}, {transform_indices = @transform_13, window_bounds = array<i64: 1, 1024>}]} {
    %c0 = arith.constant 0 : index
    %c0_0 = arith.constant 0 : index
    %0 = vector.load %arg1[%c0, %c0_0] : memref<32x1024xf32, #tpu.memory_space<vmem>>, vector<32x1024xf32>
    %c0_1 = arith.constant 0 : index
    %c0_2 = arith.constant 0 : index
    %1 = vector.load %arg2[%c0_1, %c0_2] : memref<64x32xbf16, #tpu.memory_space<vmem>>, vector<64x32xbf16>
    %2 = arith.truncf %0 : vector<32x1024xf32> to vector<32x1024xbf16>
    %cst = arith.constant dense<0.000000e+00> : vector<64x1024xf32>
    %3 = tpu.matmul %1, %2, %cst {dimension_numbers = #tpu.dot_dimension_numbers<[1], [0], [0], [1], [0, 0, 1, 1], [], []>} : vector<64x32xbf16>, vector<32x1024xbf16>, vector<64x1024xf32> -> vector<64x1024xf32>
    %c0_3 = arith.constant 0 : index
    %c0_4 = arith.constant 0 : index
    %4 = vector.load %arg3[%c0_3, %c0_4] : memref<64x1xf32, #tpu.memory_space<vmem>>, vector<64x1xf32>
    %5 = vector.broadcast %4 : vector<64x1xf32> to vector<64x1024xf32>
    %6 = arith.addf %3, %5 : vector<64x1024xf32>
    %cst_5 = arith.constant 0.000000e+00 : f32
    %7 = vector.broadcast %cst_5 : f32 to vector<64x1024xf32>
    %8 = arith.maximumf %6, %7 : vector<64x1024xf32>
    %c0_6 = arith.constant 0 : index
    %c0_7 = arith.constant 0 : index
    %9 = vector.load %arg4[%c0_6, %c0_7] : memref<64x64xbf16, #tpu.memory_space<vmem>>, vector<64x64xbf16>
    %10 = arith.truncf %8 : vector<64x1024xf32> to vector<64x1024xbf16>
    %cst_8 = arith.constant dense<0.000000e+00> : vector<64x1024xf32>
    %11 = tpu.matmul %9, %10, %cst_8 {dimension_numbers = #tpu.dot_dimension_numbers<[1], [0], [0], [1], [0, 0, 1, 1], [], []>} : vector<64x64xbf16>, vector<64x1024xbf16>, vector<64x1024xf32> -> vector<64x1024xf32>
    %c0_9 = arith.constant 0 : index
    %c0_10 = arith.constant 0 : index
    %12 = vector.load %arg5[%c0_9, %c0_10] : memref<64x1xf32, #tpu.memory_space<vmem>>, vector<64x1xf32>
    %13 = vector.broadcast %12 : vector<64x1xf32> to vector<64x1024xf32>
    %14 = arith.addf %11, %13 : vector<64x1024xf32>
    %cst_11 = arith.constant 0.000000e+00 : f32
    %15 = vector.broadcast %cst_11 : f32 to vector<64x1024xf32>
    %16 = arith.maximumf %14, %15 : vector<64x1024xf32>
    %c0_12 = arith.constant 0 : index
    %c0_13 = arith.constant 0 : index
    %17 = vector.load %arg6[%c0_12, %c0_13] : memref<32x64xbf16, #tpu.memory_space<vmem>>, vector<32x64xbf16>
    %18 = arith.truncf %16 : vector<64x1024xf32> to vector<64x1024xbf16>
    %cst_14 = arith.constant dense<0.000000e+00> : vector<32x1024xf32>
    %19 = tpu.matmul %17, %18, %cst_14 {dimension_numbers = #tpu.dot_dimension_numbers<[1], [0], [0], [1], [0, 0, 1, 1], [], []>} : vector<32x64xbf16>, vector<64x1024xbf16>, vector<32x1024xf32> -> vector<32x1024xf32>
    %c0_15 = arith.constant 0 : index
    %c0_16 = arith.constant 0 : index
    %20 = vector.load %arg7[%c0_15, %c0_16] : memref<32x1xf32, #tpu.memory_space<vmem>>, vector<32x1xf32>
    %21 = vector.broadcast %20 : vector<32x1xf32> to vector<32x1024xf32>
    %22 = arith.addf %19, %21 : vector<32x1024xf32>
    %cst_17 = arith.constant 0.000000e+00 : f32
    %23 = vector.broadcast %cst_17 : f32 to vector<32x1024xf32>
    %24 = arith.maximumf %22, %23 : vector<32x1024xf32>
    %c0_18 = arith.constant 0 : index
    %c0_19 = arith.constant 0 : index
    %25 = vector.load %arg8[%c0_18, %c0_19] : memref<32x32xbf16, #tpu.memory_space<vmem>>, vector<32x32xbf16>
    %26 = arith.truncf %24 : vector<32x1024xf32> to vector<32x1024xbf16>
    %cst_20 = arith.constant dense<0.000000e+00> : vector<32x1024xf32>
    %27 = tpu.matmul %25, %26, %cst_20 {dimension_numbers = #tpu.dot_dimension_numbers<[1], [0], [0], [1], [0, 0, 1, 1], [], []>} : vector<32x32xbf16>, vector<32x1024xbf16>, vector<32x1024xf32> -> vector<32x1024xf32>
    %c0_21 = arith.constant 0 : index
    %c0_22 = arith.constant 0 : index
    %28 = vector.load %arg9[%c0_21, %c0_22] : memref<32x1xf32, #tpu.memory_space<vmem>>, vector<32x1xf32>
    %29 = vector.broadcast %28 : vector<32x1xf32> to vector<32x1024xf32>
    %30 = arith.addf %27, %29 : vector<32x1024xf32>
    %cst_23 = arith.constant 0.000000e+00 : f32
    %31 = vector.broadcast %cst_23 : f32 to vector<32x1024xf32>
    %32 = arith.maximumf %30, %31 : vector<32x1024xf32>
    %c0_24 = arith.constant 0 : index
    %c0_25 = arith.constant 0 : index
    %33 = vector.load %arg10[%c0_24, %c0_25] : memref<16x32xbf16, #tpu.memory_space<vmem>>, vector<16x32xbf16>
    %34 = arith.truncf %32 : vector<32x1024xf32> to vector<32x1024xbf16>
    %cst_26 = arith.constant dense<0.000000e+00> : vector<16x1024xf32>
    %35 = tpu.matmul %33, %34, %cst_26 {dimension_numbers = #tpu.dot_dimension_numbers<[1], [0], [0], [1], [0, 0, 1, 1], [], []>} : vector<16x32xbf16>, vector<32x1024xbf16>, vector<16x1024xf32> -> vector<16x1024xf32>
    %c0_27 = arith.constant 0 : index
    %c0_28 = arith.constant 0 : index
    %36 = vector.load %arg11[%c0_27, %c0_28] : memref<16x1xf32, #tpu.memory_space<vmem>>, vector<16x1xf32>
    %37 = vector.broadcast %36 : vector<16x1xf32> to vector<16x1024xf32>
    %38 = arith.addf %35, %37 : vector<16x1024xf32>
    %cst_29 = arith.constant 0.000000e+00 : f32
    %39 = vector.broadcast %cst_29 : f32 to vector<16x1024xf32>
    %40 = arith.maximumf %38, %39 : vector<16x1024xf32>
    %c0_30 = arith.constant 0 : index
    %c0_31 = arith.constant 0 : index
    %41 = vector.load %arg12[%c0_30, %c0_31] : memref<16x1xf32, #tpu.memory_space<vmem>>, vector<16x1xf32>
    %42 = vector.broadcast %41 : vector<16x1xf32> to vector<16x1024xf32>
    %43 = arith.mulf %40, %42 : vector<16x1024xf32>
    %cst_32 = arith.constant dense<0.000000e+00> : vector<1024xf32>
    %44 = vector.multi_reduction <add>, %43, %cst_32 [0] : vector<16x1024xf32> to vector<1024xf32>
    %45 = vector.shape_cast %44 : vector<1024xf32> to vector<1x1024xf32>
    %c0_33 = arith.constant 0 : index
    %c0_34 = arith.constant 0 : index
    %46 = vector.load %arg13[%c0_33, %c0_34] : memref<1x1xf32, #tpu.memory_space<vmem>>, vector<1x1xf32>
    %47 = vector.broadcast %46 : vector<1x1xf32> to vector<1x1024xf32>
    %48 = arith.addf %45, %47 : vector<1x1024xf32>
    %c0_35 = arith.constant 0 : index
    %c0_36 = arith.constant 0 : index
    %49 = vector.load %arg14[%c0_35, %c0_36] : memref<1x1024xf32, #tpu.memory_space<vmem>>, vector<1x1024xf32>
    tpu.vector_store %arg14[%c0_35, %c0_36], %48 {strides = array<i32>} : memref<1x1024xf32, #tpu.memory_space<vmem>>, vector<1x1024xf32>,
    return
  }
  func.func @transform_0(%arg0: i32) -> (i32, i32) {
    %c0_i32 = arith.constant 0 : i32
    %c0_i32_0 = arith.constant 0 : i32
    return %c0_i32, %arg0 : i32, i32
  }
  func.func @transform_1(%arg0: i32) -> (i32, i32) {
    %c0_i32 = arith.constant 0 : i32
    %c0_i32_0 = arith.constant 0 : i32
    %c0_i32_1 = arith.constant 0 : i32
    return %c0_i32, %c0_i32_0 : i32, i32
  }
  func.func @transform_2(%arg0: i32) -> (i32, i32) {
    %c0_i32 = arith.constant 0 : i32
    %c0_i32_0 = arith.constant 0 : i32
    %c0_i32_1 = arith.constant 0 : i32
    return %c0_i32, %c0_i32_0 : i32, i32
  }
  func.func @transform_3(%arg0: i32) -> (i32, i32) {
    %c0_i32 = arith.constant 0 : i32
    %c0_i32_0 = arith.constant 0 : i32
    %c0_i32_1 = arith.constant 0 : i32
    return %c0_i32, %c0_i32_0 : i32, i32
  }
  func.func @transform_4(%arg0: i32) -> (i32, i32) {
    %c0_i32 = arith.constant 0 : i32
    %c0_i32_0 = arith.constant 0 : i32
    %c0_i32_1 = arith.constant 0 : i32
    return %c0_i32, %c0_i32_0 : i32, i32
  }
  func.func @transform_5(%arg0: i32) -> (i32, i32) {
    %c0_i32 = arith.constant 0 : i32
    %c0_i32_0 = arith.constant 0 : i32
    %c0_i32_1 = arith.constant 0 : i32
    return %c0_i32, %c0_i32_0 : i32, i32
  }
  func.func @transform_6(%arg0: i32) -> (i32, i32) {
    %c0_i32 = arith.constant 0 : i32
    %c0_i32_0 = arith.constant 0 : i32
    %c0_i32_1 = arith.constant 0 : i32
    return %c0_i32, %c0_i32_0 : i32, i32
  }
  func.func @transform_7(%arg0: i32) -> (i32, i32) {
    %c0_i32 = arith.constant 0 : i32
    %c0_i32_0 = arith.constant 0 : i32
    %c0_i32_1 = arith.constant 0 : i32
    return %c0_i32, %c0_i32_0 : i32, i32
  }
  func.func @transform_8(%arg0: i32) -> (i32, i32) {
    %c0_i32 = arith.constant 0 : i32
    %c0_i32_0 = arith.constant 0 : i32
    %c0_i32_1 = arith.constant 0 : i32
    return %c0_i32, %c0_i32_0 : i32, i32
  }
  func.func @transform_9(%arg0: i32) -> (i32, i32) {
    %c0_i32 = arith.constant 0 : i32
    %c0_i32_0 = arith.constant 0 : i32
    %c0_i32_1 = arith.constant 0 : i32
    return %c0_i32, %c0_i32_0 : i32, i32
  }
  func.func @transform_10(%arg0: i32) -> (i32, i32) {
    %c0_i32 = arith.constant 0 : i32
    %c0_i32_0 = arith.constant 0 : i32
    %c0_i32_1 = arith.constant 0 : i32
    return %c0_i32, %c0_i32_0 : i32, i32
  }
  func.func @transform_11(%arg0: i32) -> (i32, i32) {
    %c0_i32 = arith.constant 0 : i32
    %c0_i32_0 = arith.constant 0 : i32
    %c0_i32_1 = arith.constant 0 : i32
    return %c0_i32, %c0_i32_0 : i32, i32
  }
  func.func @transform_12(%arg0: i32) -> (i32, i32) {
    %c0_i32 = arith.constant 0 : i32
    %c0_i32_0 = arith.constant 0 : i32
    %c0_i32_1 = arith.constant 0 : i32
    return %c0_i32, %c0_i32_0 : i32, i32
  }
  func.func @transform_13(%arg0: i32) -> (i32, i32) {
    %c0_i32 = arith.constant 0 : i32
    %c0_i32_0 = arith.constant 0 : i32
    return %c0_i32, %arg0 : i32, i32
  }
}

</mosaic_0001>

<llo_original>
// kernel: qat_mlp_forward.1
$region0: #{qat_mlp_forward.1}
  #allocation0 [shape = 'u32[]', space=smem, size = 0x4, offset = 0x4, fixed_abs, tag = 'smem constant byte address 0x4 - core index']
  #allocation1 [shape = 'u32[144,128]{1,0:T(1,128)}', space=vmem, size = 0x12000, scoped, tag = 'internal scratch']
  #allocation2 [shape = 'f32[1,1]{1,0:T(1,128)S(1)}', space=vmem, size = 0x200, scoped, tag = 'scoped memory for qat_mlp_forward.1']
  %s0 = inlined_call_operand.vmem [shape: f32[32,1024], index: 0, kind: input, shape index: {}]
  %s1 = inlined_call_operand.vmem [shape: bf16[64,32], index: 1, kind: input, shape index: {}]
  %s2 = inlined_call_operand.vmem [shape: f32[64,1], index: 2, kind: input, shape index: {}]
  %s3 = inlined_call_operand.vmem [shape: bf16[64,64], index: 3, kind: input, shape index: {}]
  %s4 = inlined_call_operand.vmem [shape: f32[64,1], index: 4, kind: input, shape index: {}]
  %s5 = inlined_call_operand.vmem [shape: bf16[32,64], index: 5, kind: input, shape index: {}]
  %s6 = inlined_call_operand.vmem [shape: f32[32,1], index: 6, kind: input, shape index: {}]
  %s7 = inlined_call_operand.hbm [shape: bf16[32,32], index: 7, kind: input, shape index: {}]
  %s8 = inlined_call_operand.vmem [shape: f32[32,1], index: 8, kind: input, shape index: {}]
  %s9 = inlined_call_operand.vmem [shape: bf16[16,32], index: 9, kind: input, shape index: {}]
  %s10 = inlined_call_operand.vmem [shape: f32[16,1], index: 10, kind: input, shape index: {}]
  %s11 = inlined_call_operand.vmem [shape: f32[16,1], index: 11, kind: input, shape index: {}]
  %s12 = inlined_call_operand.<no memory space> [shape: f32[1,1], index: 12, kind: input, shape index: {}]
  %s13 = inlined_call_operand.hbm [shape: f32[1,1024], index: 13, kind: output, shape index: {}]
  %s14 = sld [smem:[#allocation0]]
  $region66: #{qat_mlp_forward.1} parent=0
    _
  %s16 = ssub.s32 1, %s14
  %s17 = scalar_select 0, %s16, %s14
  %v18 = vstv %s12
  %19 = vst [vmem:[#allocation2] sm:$0x1] %v18
  $region1: #{qat_mlp_forward.1} parent=0
    #allocation3 [shape = 'u8[8192]{0}', space=vmem, size = 0x2000, scoped, tag = 'input window, operand 7, single buffered']
    #allocation4 [shape = 's32[1]{0}', space=sflag, size = 0x4, scoped, tag = 'scoped memory for qat_mlp_forward.1']
    #allocation5 [shape = 's32[1]{0}', space=sflag, size = 0x4, scoped, tag = 'scoped memory for qat_mlp_forward.1']
    #allocation6 [shape = 'u8[4096]{0}', space=vmem, size = 0x1000, scoped, tag = 'output window, operand 0, single buffered']
    %20 = vsyncpa [#allocation4], 0
    %21 = vsyncpa [#allocation5], 0
    // Predicated region
    $region2: #{qat_mlp_forward.1} parent=1 // pred_check
      _
    $region3: #{qat_mlp_forward.1} parent=1 // pred_check_branch
      %23 = sbr.rel (0) target = $region5
    $region4: #{qat_mlp_forward.1} parent=1 // pred_region
      _
    $region5: #{qat_mlp_forward.1} parent=1 // pred_fallthru
      _
    // Predicated region
    $region6: #{qat_mlp_forward.1} parent=1 // pred_check
      _
    $region7: #{qat_mlp_forward.1} parent=1 // pred_check_branch
      %25 = sbr.rel (0) target = $region9
    $region8: #{qat_mlp_forward.1} parent=1 // pred_region
      _
    $region9: #{qat_mlp_forward.1} parent=1 // pred_fallthru
      _
    // Predicated region
    $region10: #{qat_mlp_forward.1} parent=1 // pred_check
      _
    $region11: #{qat_mlp_forward.1} parent=1 // pred_check_branch
      %27 = sbr.rel (0) target = $region13
    $region12: #{qat_mlp_forward.1} parent=1 // pred_region
      _
    $region13: #{qat_mlp_forward.1} parent=1 // pred_fallthru
      _
    // Predicated region
    $region14: #{qat_mlp_forward.1} parent=1 // pred_check
      _
    $region15: #{qat_mlp_forward.1} parent=1 // pred_check_branch
      %29 = sbr.rel (0) target = $region17
    $region16: #{qat_mlp_forward.1} parent=1 // pred_region
      _
    $region17: #{qat_mlp_forward.1} parent=1 // pred_fallthru
      _
    // Predicated region
    $region18: #{qat_mlp_forward.1} parent=1 // pred_check
      _
    $region19: #{qat_mlp_forward.1} parent=1 // pred_check_branch
      %31 = sbr.rel (0) target = $region21
    $region20: #{qat_mlp_forward.1} parent=1 // pred_region
      _
    $region21: #{qat_mlp_forward.1} parent=1 // pred_fallthru
      _
    // Predicated region
    $region22: #{qat_mlp_forward.1} parent=1 // pred_check
      _
    $region23: #{qat_mlp_forward.1} parent=1 // pred_check_branch
      %33 = sbr.rel (0) target = $region25
    $region24: #{qat_mlp_forward.1} parent=1 // pred_region
      _
    $region25: #{qat_mlp_forward.1} parent=1 // pred_fallthru
      _
    // Predicated region
    $region26: #{qat_mlp_forward.1} parent=1 // pred_check
      _
    $region27: #{qat_mlp_forward.1} parent=1 // pred_check_branch
      %35 = sbr.rel (0) target = $region29
    $region28: #{qat_mlp_forward.1} parent=1 // pred_region
      _
    $region29: #{qat_mlp_forward.1} parent=1 // pred_fallthru
      _
    // Predicated region
    $region30: #{qat_mlp_forward.1} parent=1 // pred_check
      _
    $region31: #{qat_mlp_forward.1} parent=1 // pred_check_branch
      %37 = sbr.rel (0) target = $region33
    $region32: #{qat_mlp_forward.1} parent=1 // pred_region
      %s39 = ssub.s32 256, 256
      %40 = vsyncadd [#allocation4], %s39
      %s41 = sshll.u32 [#allocation3], 4
      %s42 = int_to_ptr.vmem [resolvable:$true] %s41
      %47 = dma.hbm_to_vmem [thread:$0]  %s7, 256, %s42, [#allocation4], 64, 64, 4
    $region33: #{qat_mlp_forward.1} parent=1 // pred_fallthru
      _
    // Predicated region
    $region34: #{qat_mlp_forward.1} parent=1 // pred_check
      _
    $region35: #{qat_mlp_forward.1} parent=1 // pred_check_branch
      %49 = sbr.rel (0) target = $region37
    $region36: #{qat_mlp_forward.1} parent=1 // pred_region
      _
    $region37: #{qat_mlp_forward.1} parent=1 // pred_fallthru
      _
    // Predicated region
    $region38: #{qat_mlp_forward.1} parent=1 // pred_check
      _
    $region39: #{qat_mlp_forward.1} parent=1 // pred_check_branch
      %51 = sbr.rel (0) target = $region41
    $region40: #{qat_mlp_forward.1} parent=1 // pred_region
      _
    $region41: #{qat_mlp_forward.1} parent=1 // pred_fallthru
      _
    // Predicated region
    $region42: #{qat_mlp_forward.1} parent=1 // pred_check
      _
    $region43: #{qat_mlp_forward.1} parent=1 // pred_check_branch
      %53 = sbr.rel (0) target = $region45
    $region44: #{qat_mlp_forward.1} parent=1 // pred_region
      _
    $region45: #{qat_mlp_forward.1} parent=1 // pred_fallthru
      _
    // Predicated region
    $region46: #{qat_mlp_forward.1} parent=1 // pred_check
      _
    $region47: #{qat_mlp_forward.1} parent=1 // pred_check_branch
      %55 = sbr.rel (0) target = $region49
    $region48: #{qat_mlp_forward.1} parent=1 // pred_region
      _
    $region49: #{qat_mlp_forward.1} parent=1 // pred_fallthru
      _
    // Predicated region
    $region50: #{qat_mlp_forward.1} parent=1 // pred_check
      _
    $region51: #{qat_mlp_forward.1} parent=1 // pred_check_branch
      %57 = sbr.rel (0) target = $region53
    $region52: #{qat_mlp_forward.1} parent=1 // pred_region
      _
    $region53: #{qat_mlp_forward.1} parent=1 // pred_fallthru
      _
    // Predicated region
    $region54: #{qat_mlp_forward.1} parent=1 // pred_check
      _
    $region55: #{qat_mlp_forward.1} parent=1 // pred_check_branch
      %59 = sbr.rel (0) target = $region57
    $region56: #{qat_mlp_forward.1} parent=1 // pred_region
      %60 = dma.done [#allocation4], 256
    $region57: #{qat_mlp_forward.1} parent=1 // pred_fallthru
      _
    %v62 = vld [vmem:[%s0] sm:$0xff]
    %v63 = vld [vmem:[%s0 + $0x8] sm:$0xff]
    %v64 = vld [vmem:[%s0 + $0x10] sm:$0xff]
    %v65 = vld [vmem:[%s0 + $0x18] sm:$0xff]
    %v66 = vld [vmem:[%s0 + $0x20] sm:$0xff]
    %v67 = vld [vmem:[%s0 + $0x28] sm:$0xff]
    %v68 = vld [vmem:[%s0 + $0x30] sm:$0xff]
    %v69 = vld [vmem:[%s0 + $0x38] sm:$0xff]
    %v70 = vld [vmem:[%s0 + $0x40] sm:$0xff]
    %v71 = vld [vmem:[%s0 + $0x48] sm:$0xff]
    %v72 = vld [vmem:[%s0 + $0x50] sm:$0xff]
    %v73 = vld [vmem:[%s0 + $0x58] sm:$0xff]
    %v74 = vld [vmem:[%s0 + $0x60] sm:$0xff]
    %v75 = vld [vmem:[%s0 + $0x68] sm:$0xff]
    %v76 = vld [vmem:[%s0 + $0x70] sm:$0xff]
    %v77 = vld [vmem:[%s0 + $0x78] sm:$0xff]
    %v78 = vld [vmem:[%s0 + $0x80] sm:$0xff]
    %v79 = vld [vmem:[%s0 + $0x88] sm:$0xff]
    %v80 = vld [vmem:[%s0 + $0x90] sm:$0xff]
    %v81 = vld [vmem:[%s0 + $0x98] sm:$0xff]
    %v82 = vld [vmem:[%s0 + $0xa0] sm:$0xff]
    %v83 = vld [vmem:[%s0 + $0xa8] sm:$0xff]
    %v84 = vld [vmem:[%s0 + $0xb0] sm:$0xff]
    %v85 = vld [vmem:[%s0 + $0xb8] sm:$0xff]
    %v86 = vld [vmem:[%s0 + $0xc0] sm:$0xff]
    %v87 = vld [vmem:[%s0 + $0xc8] sm:$0xff]
    %v88 = vld [vmem:[%s0 + $0xd0] sm:$0xff]
    %v89 = vld [vmem:[%s0 + $0xd8] sm:$0xff]
    %v90 = vld [vmem:[%s0 + $0xe0] sm:$0xff]
    %v91 = vld [vmem:[%s0 + $0xe8] sm:$0xff]
    %v92 = vld [vmem:[%s0 + $0xf0] sm:$0xff]
    %v93 = vld [vmem:[%s0 + $0xf8] sm:$0xff]
    %v94 = vld [vmem:[%s1] sm:$0xf]
    %v95 = vld [vmem:[%s1 + $0x4] sm:$0xf]
    %v96 = vld [vmem:[%s1 + $0x8] sm:$0xf]
    %v97 = vld [vmem:[%s1 + $0xc] sm:$0xf]
    %v98 = vld [vmem:[%s1 + $0x10] sm:$0xf]
    %v99 = vld [vmem:[%s1 + $0x14] sm:$0xf]
    %v100 = vld [vmem:[%s1 + $0x18] sm:$0xf]
    %v101 = vld [vmem:[%s1 + $0x1c] sm:$0xf]
    %v102 = vpack.c.bf16 %v70, %v62
    %v103 = vpack.c.bf16 %v71, %v63
    %v104 = vpack.c.bf16 %v72, %v64
    %v105 = vpack.c.bf16 %v73, %v65
    %v106 = vpack.c.bf16 %v74, %v66
    %v107 = vpack.c.bf16 %v75, %v67
    %v108 = vpack.c.bf16 %v76, %v68
    %v109 = vpack.c.bf16 %v77, %v69
    %v110 = vpack.c.bf16 %v86, %v78
    %v111 = vpack.c.bf16 %v87, %v79
    %v112 = vpack.c.bf16 %v88, %v80
    %v113 = vpack.c.bf16 %v89, %v81
    %v114 = vpack.c.bf16 %v90, %v82
    %v115 = vpack.c.bf16 %v91, %v83
    %v116 = vpack.c.bf16 %v92, %v84
    %v117 = vpack.c.bf16 %v93, %v85
    %v118 = vld [vmem:[%s2] sm:$0xff]
    %v119 = vld [vmem:[%s2 + $0x8] sm:$0xff]
    %v120 = vld [vmem:[%s2 + $0x10] sm:$0xff]
    %v121 = vld [vmem:[%s2 + $0x18] sm:$0xff]
    %v122 = vld [vmem:[%s2 + $0x20] sm:$0xff]
    %v123 = vld [vmem:[%s2 + $0x28] sm:$0xff]
    %v124 = vld [vmem:[%s2 + $0x30] sm:$0xff]
    %v125 = vld [vmem:[%s2 + $0x38] sm:$0xff]
    %127 = vset.pattern.permute.xlu0 0
    %128 = vperm.xlu0 %127, %v118
    %v129 = vpop.permute.xlu0 %128
    %132 = vset.pattern.permute.xlu0 0
    %133 = vperm.xlu0 %132, %v119
    %v134 = vpop.permute.xlu0 %133
    %137 = vset.pattern.permute.xlu0 0
    %138 = vperm.xlu0 %137, %v120
    %v139 = vpop.permute.xlu0 %138
    %142 = vset.pattern.permute.xlu0 0
    %143 = vperm.xlu0 %142, %v121
    %v144 = vpop.permute.xlu0 %143
    %147 = vset.pattern.permute.xlu0 0
    %148 = vperm.xlu0 %147, %v122
    %v149 = vpop.permute.xlu0 %148
    %152 = vset.pattern.permute.xlu0 0
    %153 = vperm.xlu0 %152, %v123
    %v154 = vpop.permute.xlu0 %153
    %157 = vset.pattern.permute.xlu0 0
    %158 = vperm.xlu0 %157, %v124
    %v159 = vpop.permute.xlu0 %158
    %162 = vset.pattern.permute.xlu0 0
    %163 = vperm.xlu0 %162, %v125
    %v164 = vpop.permute.xlu0 %163
    %v174 = vunpack.c.l.b16 %v94
    %v175 = vunpack.c.l.b16 %v95
    %v176 = vunpack.c.l.b16 %v96
    %v177 = vunpack.c.l.b16 %v97
    %v178 = vunpack.c.l.b16 %v98
    %v179 = vunpack.c.l.b16 %v99
    %v180 = vunpack.c.l.b16 %v100
    %v181 = vunpack.c.l.b16 %v101
    %v182 = vpack.c.b16 %v175, %v174
    %v183 = vpack.c.b16 %v177, %v176
    %v184 = vpack.c.b16 %v179, %v178
    %v185 = vpack.c.b16 %v181, %v180
    %vm186 = vcmask 261120
    %v188 = vsel %vm186, %v182, 0
    %v191 = vsel %vm186, %v183, 0
    %v194 = vsel %vm186, %v184, 0
    %v197 = vsel %vm186, %v185, 0
    %199 = vmatprep.subr.bf16.mxu0 %v103
    %200 = vmatpush1.bf16.msra.mxu0 %v102
    %201 = vmatprep.subr.bf16.mxu0 %v111
    %202 = vmatpush1.bf16.msra.mxu0 %v110
    %203 = vmatprep.subr.bf16.mxu0 0
    %204 = vmatpush1.bf16.msra.mxu0 0
    %205 = vmatprep.subr.bf16.mxu0 0
    %206 = vmatpush1.bf16.msra.mxu0 0
    %207 = vmatprep.subr.bf16.mxu0 0
    %208 = vmatpush1.bf16.msra.mxu0 0
    %209 = vmatprep.subr.bf16.mxu0 0
    %210 = vmatpush1.bf16.msra.mxu0 0
    %211 = vmatprep.subr.bf16.mxu0 0
    %212 = vmatpush1.bf16.msra.mxu0 0
    %213 = vmatprep.subr.bf16.mxu0 0
    %214 = vmatpush1.bf16.msra.mxu0 0
    %215 = vmatprep.subr.bf16.mxu0 0
    %216 = vmatpush1.bf16.msra.mxu0 0
    %217 = vmatprep.subr.bf16.mxu0 0
    %218 = vmatpush1.bf16.msra.mxu0 0
    %219 = vmatprep.subr.bf16.mxu0 0
    %220 = vmatpush1.bf16.msra.mxu0 0
    %221 = vmatprep.subr.bf16.mxu0 0
    %222 = vmatpush1.bf16.msra.mxu0 0
    %223 = vmatprep.subr.bf16.mxu0 0
    %224 = vmatpush1.bf16.msra.mxu0 0
    %225 = vmatprep.subr.bf16.mxu0 0
    %226 = vmatpush1.bf16.msra.mxu0 0
    %227 = vmatprep.subr.bf16.mxu0 0
    %228 = vmatpush1.bf16.msra.mxu0 0
    %229 = vmatprep.subr.bf16.mxu0 0
    %230 = vmatpush1.bf16.msra.mxu0 0
    %231 = vmatprep.mubr.bf16.mxu0 0
    %232 = vmatmul.mubr.bf16.gmra.mrb[0].mxu0 %v188
    %v233 = vpop.f32.mrb[0].mxu0
    %v234 = vadd.f32 %v129, %v233
    %v235 = vpop.f32.mrb[0].mxu0
    %v236 = vadd.f32 %v129, %v235
    %v237 = vpop.f32.mrb[0].mxu0
    %v238 = vadd.f32 %v134, %v237
    %v239 = vpop.f32.mrb[0].mxu0
    %v240 = vadd.f32 %v134, %v239
    %241 = vmatprep.mubr.bf16.mxu0 0
    %242 = vmatmul.mubr.bf16.gmra.mrb[0].mxu0 %v191
    %v243 = vpop.f32.mrb[0].mxu0
    %v244 = vadd.f32 %v139, %v243
    %v245 = vpop.f32.mrb[0].mxu0
    %v246 = vadd.f32 %v139, %v245
    %v247 = vpop.f32.mrb[0].mxu0
    %v248 = vadd.f32 %v144, %v247
    %v249 = vpop.f32.mrb[0].mxu0
    %v250 = vadd.f32 %v144, %v249
    %251 = vmatprep.mubr.bf16.mxu0 0
    %252 = vmatmul.mubr.bf16.gmra.mrb[0].mxu0 %v194
    %v253 = vpop.f32.mrb[0].mxu0
    %v254 = vadd.f32 %v149, %v253
    %v255 = vpop.f32.mrb[0].mxu0
    %v256 = vadd.f32 %v149, %v255
    %v257 = vpop.f32.mrb[0].mxu0
    %v258 = vadd.f32 %v154, %v257
    %v259 = vpop.f32.mrb[0].mxu0
    %v260 = vadd.f32 %v154, %v259
    %261 = vmatprep.mubr.bf16.mxu0 0
    %262 = vmatmul.mubr.bf16.gmra.mrb[0].mxu0 %v197
    %v263 = vpop.f32.mrb[0].mxu0
    %v264 = vadd.f32 %v159, %v263
    %v265 = vpop.f32.mrb[0].mxu0
    %v266 = vadd.f32 %v159, %v265
    %v267 = vpop.f32.mrb[0].mxu0
    %v268 = vadd.f32 %v164, %v267
    %v269 = vpop.f32.mrb[0].mxu0
    %v270 = vadd.f32 %v164, %v269
    %271 = vdwg.mxu0
    %272 = vmatprep.subr.bf16.mxu0 %v105
    %273 = vmatpush1.bf16.msra.mxu0 %v104
    %274 = vmatprep.subr.bf16.mxu0 %v113
    %275 = vmatpush1.bf16.msra.mxu0 %v112
    %276 = vmatprep.subr.bf16.mxu0 0
    %277 = vmatpush1.bf16.msra.mxu0 0
    %278 = vmatprep.subr.bf16.mxu0 0
    %279 = vmatpush1.bf16.msra.mxu0 0
    %280 = vmatprep.subr.bf16.mxu0 0
    %281 = vmatpush1.bf16.msra.mxu0 0
    %282 = vmatprep.subr.bf16.mxu0 0
    %283 = vmatpush1.bf16.msra.mxu0 0
    %284 = vmatprep.subr.bf16.mxu0 0
    %285 = vmatpush1.bf16.msra.mxu0 0
    %286 = vmatprep.subr.bf16.mxu0 0
    %287 = vmatpush1.bf16.msra.mxu0 0
    %288 = vmatprep.subr.bf16.mxu0 0
    %289 = vmatpush1.bf16.msra.mxu0 0
    %290 = vmatprep.subr.bf16.mxu0 0
    %291 = vmatpush1.bf16.msra.mxu0 0
    %292 = vmatprep.subr.bf16.mxu0 0
    %293 = vmatpush1.bf16.msra.mxu0 0
    %294 = vmatprep.subr.bf16.mxu0 0
    %295 = vmatpush1.bf16.msra.mxu0 0
    %296 = vmatprep.subr.bf16.mxu0 0
    %297 = vmatpush1.bf16.msra.mxu0 0
    %298 = vmatprep.subr.bf16.mxu0 0
    %299 = vmatpush1.bf16.msra.mxu0 0
    %300 = vmatprep.subr.bf16.mxu0 0
    %301 = vmatpush1.bf16.msra.mxu0 0
    %302 = vmatprep.subr.bf16.mxu0 0
    %303 = vmatpush1.bf16.msra.mxu0 0
    %304 = vmatprep.mubr.bf16.mxu0 0
    %305 = vmatmul.mubr.bf16.gmra.mrb[0].mxu0 %v188
    %v306 = vpop.f32.mrb[0].mxu0
    %v307 = vadd.f32 %v129, %v306
    %v308 = vpop.f32.mrb[0].mxu0
    %v309 = vadd.f32 %v129, %v308
    %v310 = vpop.f32.mrb[0].mxu0
    %v311 = vadd.f32 %v134, %v310
    %v312 = vpop.f32.mrb[0].mxu0
    %v313 = vadd.f32 %v134, %v312
    %314 = vmatprep.mubr.bf16.mxu0 0
    %315 = vmatmul.mubr.bf16.gmra.mrb[0].mxu0 %v191
    %v316 = vpop.f32.mrb[0].mxu0
    %v317 = vadd.f32 %v139, %v316
    %v318 = vpop.f32.mrb[0].mxu0
    %v319 = vadd.f32 %v139, %v318
    %v320 = vpop.f32.mrb[0].mxu0
    %v321 = vadd.f32 %v144, %v320
    %v322 = vpop.f32.mrb[0].mxu0
    %v323 = vadd.f32 %v144, %v322
    %324 = vmatprep.mubr.bf16.mxu0 0
    %325 = vmatmul.mubr.bf16.gmra.mrb[0].mxu0 %v194
    %v326 = vpop.f32.mrb[0].mxu0
    %v327 = vadd.f32 %v149, %v326
    %v328 = vpop.f32.mrb[0].mxu0
    %v329 = vadd.f32 %v149, %v328
    %v330 = vpop.f32.mrb[0].mxu0
    %v331 = vadd.f32 %v154, %v330
    %v332 = vpop.f32.mrb[0].mxu0
    %v333 = vadd.f32 %v154, %v332
    %334 = vmatprep.mubr.bf16.mxu0 0
    %335 = vmatmul.mubr.bf16.gmra.mrb[0].mxu0 %v197
    %v336 = vpop.f32.mrb[0].mxu0
    %v337 = vadd.f32 %v159, %v336
    %v338 = vpop.f32.mrb[0].mxu0
    %v339 = vadd.f32 %v159, %v338
    %v340 = vpop.f32.mrb[0].mxu0
    %v341 = vadd.f32 %v164, %v340
    %v342 = vpop.f32.mrb[0].mxu0
    %v343 = vadd.f32 %v164, %v342
    %344 = vdwg.mxu0
    %345 = vmatprep.subr.bf16.mxu0 %v107
    %346 = vmatpush1.bf16.msra.mxu0 %v106
    %347 = vmatprep.subr.bf16.mxu0 %v115
    %348 = vmatpush1.bf16.msra.mxu0 %v114
    %349 = vmatprep.subr.bf16.mxu0 0
    %350 = vmatpush1.bf16.msra.mxu0 0
    %351 = vmatprep.subr.bf16.mxu0 0
    %352 = vmatpush1.bf16.msra.mxu0 0
    %353 = vmatprep.subr.bf16.mxu0 0
    %354 = vmatpush1.bf16.msra.mxu0 0
    %355 = vmatprep.subr.bf16.mxu0 0
    %356 = vmatpush1.bf16.msra.mxu0 0
    %357 = vmatprep.subr.bf16.mxu0 0
    %358 = vmatpush1.bf16.msra.mxu0 0
    %359 = vmatprep.subr.bf16.mxu0 0
    %360 = vmatpush1.bf16.msra.mxu0 0
    %361 = vmatprep.subr.bf16.mxu0 0
    %362 = vmatpush1.bf16.msra.mxu0 0
    %363 = vmatprep.subr.bf16.mxu0 0
    %364 = vmatpush1.bf16.msra.mxu0 0
    %365 = vmatprep.subr.bf16.mxu0 0
    %366 = vmatpush1.bf16.msra.mxu0 0
    %367 = vmatprep.subr.bf16.mxu0 0
    %368 = vmatpush1.bf16.msra.mxu0 0
    %369 = vmatprep.subr.bf16.mxu0 0
    %370 = vmatpush1.bf16.msra.mxu0 0
    %371 = vmatprep.subr.bf16.mxu0 0
    %372 = vmatpush1.bf16.msra.mxu0 0
    %373 = vmatprep.subr.bf16.mxu0 0
    %374 = vmatpush1.bf16.msra.mxu0 0
    %375 = vmatprep.subr.bf16.mxu0 0
    %376 = vmatpush1.bf16.msra.mxu0 0
    %377 = vmatprep.mubr.bf16.mxu0 0
    %378 = vmatmul.mubr.bf16.gmra.mrb[0].mxu0 %v188
    %v379 = vpop.f32.mrb[0].mxu0
    %v380 = vadd.f32 %v129, %v379
    %v381 = vpop.f32.mrb[0].mxu0
    %v382 = vadd.f32 %v129, %v381
    %v383 = vpop.f32.mrb[0].mxu0
    %v384 = vadd.f32 %v134, %v383
    %v385 = vpop.f32.mrb[0].mxu0
    %v386 = vadd.f32 %v134, %v385
    %387 = vmatprep.mubr.bf16.mxu0 0
    %388 = vmatmul.mubr.bf16.gmra.mrb[0].mxu0 %v191
    %v389 = vpop.f32.mrb[0].mxu0
    %v390 = vadd.f32 %v139, %v389
    %v391 = vpop.f32.mrb[0].mxu0
    %v392 = vadd.f32 %v139, %v391
    %v393 = vpop.f32.mrb[0].mxu0
    %v394 = vadd.f32 %v144, %v393
    %v395 = vpop.f32.mrb[0].mxu0
    %v396 = vadd.f32 %v144, %v395
    %397 = vmatprep.mubr.bf16.mxu0 0
    %398 = vmatmul.mubr.bf16.gmra.mrb[0].mxu0 %v194
    %v399 = vpop.f32.mrb[0].mxu0
    %v400 = vadd.f32 %v149, %v399
    %v401 = vpop.f32.mrb[0].mxu0
    %v402 = vadd.f32 %v149, %v401
    %v403 = vpop.f32.mrb[0].mxu0
    %v404 = vadd.f32 %v154, %v403
    %v405 = vpop.f32.mrb[0].mxu0
    %v406 = vadd.f32 %v154, %v405
    %407 = vmatprep.mubr.bf16.mxu0 0
    %408 = vmatmul.mubr.bf16.gmra.mrb[0].mxu0 %v197
    %v409 = vpop.f32.mrb[0].mxu0
    %v410 = vadd.f32 %v159, %v409
    %v411 = vpop.f32.mrb[0].mxu0
    %v412 = vadd.f32 %v159, %v411
    %v413 = vpop.f32.mrb[0].mxu0
    %v414 = vadd.f32 %v164, %v413
    %v415 = vpop.f32.mrb[0].mxu0
    %v416 = vadd.f32 %v164, %v415
    %417 = vdwg.mxu0
    %418 = vmatprep.subr.bf16.mxu0 %v109
    %419 = vmatpush1.bf16.msra.mxu0 %v108
    %420 = vmatprep.subr.bf16.mxu0 %v117
    %421 = vmatpush1.bf16.msra.mxu0 %v116
    %422 = vmatprep.subr.bf16.mxu0 0
    %423 = vmatpush1.bf16.msra.mxu0 0
    %424 = vmatprep.subr.bf16.mxu0 0
    %425 = vmatpush1.bf16.msra.mxu0 0
    %426 = vmatprep.subr.bf16.mxu0 0
    %427 = vmatpush1.bf16.msra.mxu0 0
    %428 = vmatprep.subr.bf16.mxu0 0
    %429 = vmatpush1.bf16.msra.mxu0 0
    %430 = vmatprep.subr.bf16.mxu0 0
    %431 = vmatpush1.bf16.msra.mxu0 0
    %432 = vmatprep.subr.bf16.mxu0 0
    %433 = vmatpush1.bf16.msra.mxu0 0
    %434 = vmatprep.subr.bf16.mxu0 0
    %435 = vmatpush1.bf16.msra.mxu0 0
    %436 = vmatprep.subr.bf16.mxu0 0
    %437 = vmatpush1.bf16.msra.mxu0 0
    %438 = vmatprep.subr.bf16.mxu0 0
    %439 = vmatpush1.bf16.msra.mxu0 0
    %440 = vmatprep.subr.bf16.mxu0 0
    %441 = vmatpush1.bf16.msra.mxu0 0
    %442 = vmatprep.subr.bf16.mxu0 0
    %443 = vmatpush1.bf16.msra.mxu0 0
    %444 = vmatprep.subr.bf16.mxu0 0
    %445 = vmatpush1.bf16.msra.mxu0 0
    %446 = vmatprep.subr.bf16.mxu0 0
    %447 = vmatpush1.bf16.msra.mxu0 0
    %448 = vmatprep.subr.bf16.mxu0 0
    %449 = vmatpush1.bf16.msra.mxu0 0
    %450 = vmatprep.mubr.bf16.mxu0 0
    %451 = vmatmul.mubr.bf16.gmra.mrb[0].mxu0 %v188
    %v452 = vpop.f32.mrb[0].mxu0
    %v453 = vadd.f32 %v129, %v452
    %v454 = vpop.f32.mrb[0].mxu0
    %v455 = vadd.f32 %v129, %v454
    %v456 = vpop.f32.mrb[0].mxu0
    %v457 = vadd.f32 %v134, %v456
    %v458 = vpop.f32.mrb[0].mxu0
    %v459 = vadd.f32 %v134, %v458
    %460 = vmatprep.mubr.bf16.mxu0 0
    %461 = vmatmul.mubr.bf16.gmra.mrb[0].mxu0 %v191
    %v462 = vpop.f32.mrb[0].mxu0
    %v463 = vadd.f32 %v139, %v462
    %v464 = vpop.f32.mrb[0].mxu0
    %v465 = vadd.f32 %v139, %v464
    %v466 = vpop.f32.mrb[0].mxu0
    %v467 = vadd.f32 %v144, %v466
    %v468 = vpop.f32.mrb[0].mxu0
    %v469 = vadd.f32 %v144, %v468
    %470 = vmatprep.mubr.bf16.mxu0 0
    %471 = vmatmul.mubr.bf16.gmra.mrb[0].mxu0 %v194
    %v472 = vpop.f32.mrb[0].mxu0
    %v473 = vadd.f32 %v149, %v472
    %v474 = vpop.f32.mrb[0].mxu0
    %v475 = vadd.f32 %v149, %v474
    %v476 = vpop.f32.mrb[0].mxu0
    %v477 = vadd.f32 %v154, %v476
    %v478 = vpop.f32.mrb[0].mxu0
    %v479 = vadd.f32 %v154, %v478
    %480 = vmatprep.mubr.bf16.mxu0 0
    %481 = vmatmul.mubr.bf16.gmra.mrb[0].mxu0 %v197
    %v482 = vpop.f32.mrb[0].mxu0
    %v483 = vadd.f32 %v159, %v482
    %v484 = vpop.f32.mrb[0].mxu0
    %v485 = vadd.f32 %v159, %v484
    %v486 = vpop.f32.mrb[0].mxu0
    %v487 = vadd.f32 %v164, %v486
    %v488 = vpop.f32.mrb[0].mxu0
    %v489 = vadd.f32 %v164, %v488
    %490 = vdwg.mxu0
    %v491 = vmax.f32 %v234, 0.0
    %v492 = vmax.f32 %v236, 0.0
    %v493 = vmax.f32 %v307, 0.0
    %v494 = vmax.f32 %v309, 0.0
    %v495 = vmax.f32 %v380, 0.0
    %v496 = vmax.f32 %v382, 0.0
    %v497 = vmax.f32 %v453, 0.0
    %v498 = vmax.f32 %v455, 0.0
    %v499 = vmax.f32 %v238, 0.0
    %v500 = vmax.f32 %v240, 0.0
    %v501 = vmax.f32 %v311, 0.0
    %v502 = vmax.f32 %v313, 0.0
    %v503 = vmax.f32 %v384, 0.0
    %v504 = vmax.f32 %v386, 0.0
    %v505 = vmax.f32 %v457, 0.0
    %v506 = vmax.f32 %v459, 0.0
    %v507 = vmax.f32 %v244, 0.0
    %v508 = vmax.f32 %v246, 0.0
    %v509 = vmax.f32 %v317, 0.0
    %v510 = vmax.f32 %v319, 0.0
    %v511 = vmax.f32 %v390, 0.0
    %v512 = vmax.f32 %v392, 0.0
    %v513 = vmax.f32 %v463, 0.0
    %v514 = vmax.f32 %v465, 0.0
    %v515 = vmax.f32 %v248, 0.0
    %v516 = vmax.f32 %v250, 0.0
    %v517 = vmax.f32 %v321, 0.0
    %v518 = vmax.f32 %v323, 0.0
    %v519 = vmax.f32 %v394, 0.0
    %v520 = vmax.f32 %v396, 0.0
    %v521 = vmax.f32 %v467, 0.0
    %v522 = vmax.f32 %v469, 0.0
    %v523 = vmax.f32 %v254, 0.0
    %v524 = vmax.f32 %v256, 0.0
    %v525 = vmax.f32 %v327, 0.0
    %v526 = vmax.f32 %v329, 0.0
    %v527 = vmax.f32 %v400, 0.0
    %v528 = vmax.f32 %v402, 0.0
    %v529 = vmax.f32 %v473, 0.0
    %v530 = vmax.f32 %v475, 0.0
    %v531 = vmax.f32 %v258, 0.0
    %v532 = vmax.f32 %v260, 0.0
    %v533 = vmax.f32 %v331, 0.0
    %v534 = vmax.f32 %v333, 0.0
    %v535 = vmax.f32 %v404, 0.0
    %v536 = vmax.f32 %v406, 0.0
    %v537 = vmax.f32 %v477, 0.0
    %v538 = vmax.f32 %v479, 0.0
    %v539 = vmax.f32 %v264, 0.0
    %v540 = vmax.f32 %v266, 0.0
    %v541 = vmax.f32 %v337, 0.0
    %v542 = vmax.f32 %v339, 0.0
    %v543 = vmax.f32 %v410, 0.0
    %v544 = vmax.f32 %v412, 0.0
    %v545 = vmax.f32 %v483, 0.0
    %v546 = vmax.f32 %v485, 0.0
    %v547 = vmax.f32 %v268, 0.0
    %v548 = vmax.f32 %v270, 0.0
    %v549 = vmax.f32 %v341, 0.0
    %v550 = vmax.f32 %v343, 0.0
    %v551 = vmax.f32 %v414, 0.0
    %v552 = vmax.f32 %v416, 0.0
    %v553 = vmax.f32 %v487, 0.0
    %v554 = vmax.f32 %v489, 0.0
    %v555 = vld [vmem:[%s3] sm:$0xf]
    %v556 = vld [vmem:[%s3 + $0x4] sm:$0xf]
    %v557 = vld [vmem:[%s3 + $0x8] sm:$0xf]
    %v558 = vld [vmem:[%s3 + $0xc] sm:$0xf]
    %v559 = vld [vmem:[%s3 + $0x10] sm:$0xf]
    %v560 = vld [vmem:[%s3 + $0x14] sm:$0xf]
    %v561 = vld [vmem:[%s3 + $0x18] sm:$0xf]
    %v562 = vld [vmem:[%s3 + $0x1c] sm:$0xf]
    %v563 = vpack.c.bf16 %v499, %v491
    %v564 = vpack.c.bf16 %v500, %v492
    %v565 = vpack.c.bf16 %v501, %v493
    %v566 = vpack.c.bf16 %v502, %v494
    %v567 = vpack.c.bf16 %v503, %v495
    %v568 = vpack.c.bf16 %v504, %v496
    %v569 = vpack.c.bf16 %v505, %v497
    %v570 = vpack.c.bf16 %v506, %v498
    %v571 = vpack.c.bf16 %v515, %v507
    %v572 = vpack.c.bf16 %v516, %v508
    %v573 = vpack.c.bf16 %v517, %v509
    %v574 = vpack.c.bf16 %v518, %v510
    %v575 = vpack.c.bf16 %v519, %v511
    %v576 = vpack.c.bf16 %v520, %v512
    %v577 = vpack.c.bf16 %v521, %v513
    %v578 = vpack.c.bf16 %v522, %v514
    %v579 = vpack.c.bf16 %v531, %v523
    %v580 = vpack.c.bf16 %v532, %v524
    %v581 = vpack.c.bf16 %v533, %v525
    %v582 = vpack.c.bf16 %v534, %v526
    %v583 = vpack.c.bf16 %v535, %v527
    %v584 = vpack.c.bf16 %v536, %v528
    %v585 = vpack.c.bf16 %v537, %v529
    %v586 = vpack.c.bf16 %v538, %v530
    %v587 = vpack.c.bf16 %v547, %v539
    %v588 = vpack.c.bf16 %v548, %v540
    %v589 = vpack.c.bf16 %v549, %v541
    %v590 = vpack.c.bf16 %v550, %v542
    %v591 = vpack.c.bf16 %v551, %v543
    %v592 = vpack.c.bf16 %v552, %v544
    %v593 = vpack.c.bf16 %v553, %v545
    %v594 = vpack.c.bf16 %v554, %v546
    %v595 = vld [vmem:[%s4] sm:$0xff]
    %v596 = vld [vmem:[%s4 + $0x8] sm:$0xff]
    %v597 = vld [vmem:[%s4 + $0x10] sm:$0xff]
    %v598 = vld [vmem:[%s4 + $0x18] sm:$0xff]
    %v599 = vld [vmem:[%s4 + $0x20] sm:$0xff]
    %v600 = vld [vmem:[%s4 + $0x28] sm:$0xff]
    %v601 = vld [vmem:[%s4 + $0x30] sm:$0xff]
    %v602 = vld [vmem:[%s4 + $0x38] sm:$0xff]
    %604 = vset.pattern.permute.xlu0 0
    %605 = vperm.xlu0 %604, %v595
    %v606 = vpop.permute.xlu0 %605
    %609 = vset.pattern.permute.xlu0 0
    %610 = vperm.xlu0 %609, %v596
    %v611 = vpop.permute.xlu0 %610
    %614 = vset.pattern.permute.xlu0 0
    %615 = vperm.xlu0 %614, %v597
    %v616 = vpop.permute.xlu0 %615
    %619 = vset.pattern.permute.xlu0 0
    %620 = vperm.xlu0 %619, %v598
    %v621 = vpop.permute.xlu0 %620
    %624 = vset.pattern.permute.xlu0 0
    %625 = vperm.xlu0 %624, %v599
    %v626 = vpop.permute.xlu0 %625
    %629 = vset.pattern.permute.xlu0 0
    %630 = vperm.xlu0 %629, %v600
    %v631 = vpop.permute.xlu0 %630
    %634 = vset.pattern.permute.xlu0 0
    %635 = vperm.xlu0 %634, %v601
    %v636 = vpop.permute.xlu0 %635
    %639 = vset.pattern.permute.xlu0 0
    %640 = vperm.xlu0 %639, %v602
    %v641 = vpop.permute.xlu0 %640
    %v651 = vunpack.c.l.b16 %v555
    %v652 = vunpack.c.l.b16 %v556
    %v653 = vunpack.c.l.b16 %v557
    %v654 = vunpack.c.l.b16 %v558
    %v655 = vunpack.c.l.b16 %v559
    %v656 = vunpack.c.l.b16 %v560
    %v657 = vunpack.c.l.b16 %v561
    %v658 = vunpack.c.l.b16 %v562
    %v659 = vpack.c.b16 %v652, %v651
    %v660 = vpack.c.b16 %v654, %v653
    %v661 = vpack.c.b16 %v656, %v655
    %v662 = vpack.c.b16 %v658, %v657
    %vm663 = vcmask 523264
    %v665 = vsel %vm663, %v659, 0
    %v668 = vsel %vm663, %v660, 0
    %v671 = vsel %vm663, %v661, 0
    %v674 = vsel %vm663, %v662, 0
    %676 = vmatprep.subr.bf16.mxu0 %v564
    %677 = vmatpush1.bf16.msra.mxu0 %v563
    %678 = vmatprep.subr.bf16.mxu0 %v572
    %679 = vmatpush1.bf16.msra.mxu0 %v571
    %680 = vmatprep.subr.bf16.mxu0 %v580
    %681 = vmatpush1.bf16.msra.mxu0 %v579
    %682 = vmatprep.subr.bf16.mxu0 %v588
    %683 = vmatpush1.bf16.msra.mxu0 %v587
    %684 = vmatprep.subr.bf16.mxu0 0
    %685 = vmatpush1.bf16.msra.mxu0 0
    %686 = vmatprep.subr.bf16.mxu0 0
    %687 = vmatpush1.bf16.msra.mxu0 0
    %688 = vmatprep.subr.bf16.mxu0 0
    %689 = vmatpush1.bf16.msra.mxu0 0
    %690 = vmatprep.subr.bf16.mxu0 0
    %691 = vmatpush1.bf16.msra.mxu0 0
    %692 = vmatprep.subr.bf16.mxu0 0
    %693 = vmatpush1.bf16.msra.mxu0 0
    %694 = vmatprep.subr.bf16.mxu0 0
    %695 = vmatpush1.bf16.msra.mxu0 0
    %696 = vmatprep.subr.bf16.mxu0 0
    %697 = vmatpush1.bf16.msra.mxu0 0
    %698 = vmatprep.subr.bf16.mxu0 0
    %699 = vmatpush1.bf16.msra.mxu0 0
    %700 = vmatprep.subr.bf16.mxu0 0
    %701 = vmatpush1.bf16.msra.mxu0 0
    %702 = vmatprep.subr.bf16.mxu0 0
    %703 = vmatpush1.bf16.msra.mxu0 0
    %704 = vmatprep.subr.bf16.mxu0 0
    %705 = vmatpush1.bf16.msra.mxu0 0
    %706 = vmatprep.subr.bf16.mxu0 0
    %707 = vmatpush1.bf16.msra.mxu0 0
    %708 = vmatprep.mubr.bf16.mxu0 0
    %709 = vmatmul.mubr.bf16.gmra.mrb[0].mxu0 %v665
    %v710 = vpop.f32.mrb[0].mxu0
    %v711 = vadd.f32 %v606, %v710
    %v712 = vpop.f32.mrb[0].mxu0
    %v713 = vadd.f32 %v606, %v712
    %v714 = vpop.f32.mrb[0].mxu0
    %v715 = vadd.f32 %v611, %v714
    %v716 = vpop.f32.mrb[0].mxu0
    %v717 = vadd.f32 %v611, %v716
    %718 = vmatprep.mubr.bf16.mxu0 0
    %719 = vmatmul.mubr.bf16.gmra.mrb[0].mxu0 %v668
    %v720 = vpop.f32.mrb[0].mxu0
    %v721 = vadd.f32 %v616, %v720
    %v722 = vpop.f32.mrb[0].mxu0
    %v723 = vadd.f32 %v616, %v722
    %v724 = vpop.f32.mrb[0].mxu0
    %v725 = vadd.f32 %v621, %v724
    %v726 = vpop.f32.mrb[0].mxu0
    %v727 = vadd.f32 %v621, %v726
    %728 = vmatprep.mubr.bf16.mxu0 0
    %729 = vmatmul.mubr.bf16.gmra.mrb[0].mxu0 %v671
    %v730 = vpop.f32.mrb[0].mxu0
    %v731 = vadd.f32 %v626, %v730
    %v732 = vpop.f32.mrb[0].mxu0
    %v733 = vadd.f32 %v626, %v732
    %v734 = vpop.f32.mrb[0].mxu0
    %v735 = vadd.f32 %v631, %v734
    %v736 = vpop.f32.mrb[0].mxu0
    %v737 = vadd.f32 %v631, %v736
    %738 = vmatprep.mubr.bf16.mxu0 0
    %739 = vmatmul.mubr.bf16.gmra.mrb[0].mxu0 %v674
    %v740 = vpop.f32.mrb[0].mxu0
    %v741 = vadd.f32 %v636, %v740
    %v742 = vpop.f32.mrb[0].mxu0
    %v743 = vadd.f32 %v636, %v742
    %v744 = vpop.f32.mrb[0].mxu0
    %v745 = vadd.f32 %v641, %v744
    %v746 = vpop.f32.mrb[0].mxu0
    %v747 = vadd.f32 %v641, %v746
    %748 = vdwg.mxu0
    %749 = vmatprep.subr.bf16.mxu0 %v566
    %750 = vmatpush1.bf16.msra.mxu0 %v565
    %751 = vmatprep.subr.bf16.mxu0 %v574
    %752 = vmatpush1.bf16.msra.mxu0 %v573
    %753 = vmatprep.subr.bf16.mxu0 %v582
    %754 = vmatpush1.bf16.msra.mxu0 %v581
    %755 = vmatprep.subr.bf16.mxu0 %v590
    %756 = vmatpush1.bf16.msra.mxu0 %v589
    %757 = vmatprep.subr.bf16.mxu0 0
    %758 = vmatpush1.bf16.msra.mxu0 0
    %759 = vmatprep.subr.bf16.mxu0 0
    %760 = vmatpush1.bf16.msra.mxu0 0
    %761 = vmatprep.subr.bf16.mxu0 0
    %762 = vmatpush1.bf16.msra.mxu0 0
    %763 = vmatprep.subr.bf16.mxu0 0
    %764 = vmatpush1.bf16.msra.mxu0 0
    %765 = vmatprep.subr.bf16.mxu0 0
    %766 = vmatpush1.bf16.msra.mxu0 0
    %767 = vmatprep.subr.bf16.mxu0 0
    %768 = vmatpush1.bf16.msra.mxu0 0
    %769 = vmatprep.subr.bf16.mxu0 0
    %770 = vmatpush1.bf16.msra.mxu0 0
    %771 = vmatprep.subr.bf16.mxu0 0
    %772 = vmatpush1.bf16.msra.mxu0 0
    %773 = vmatprep.subr.bf16.mxu0 0
    %774 = vmatpush1.bf16.msra.mxu0 0
    %775 = vmatprep.subr.bf16.mxu0 0
    %776 = vmatpush1.bf16.msra.mxu0 0
    %777 = vmatprep.subr.bf16.mxu0 0
    %778 = vmatpush1.bf16.msra.mxu0 0
    %779 = vmatprep.subr.bf16.mxu0 0
    %780 = vmatpush1.bf16.msra.mxu0 0
    %781 = vmatprep.mubr.bf16.mxu0 0
    %782 = vmatmul.mubr.bf16.gmra.mrb[0].mxu0 %v665
    %v783 = vpop.f32.mrb[0].mxu0
    %v784 = vadd.f32 %v606, %v783
    %v785 = vpop.f32.mrb[0].mxu0
    %v786 = vadd.f32 %v606, %v785
    %v787 = vpop.f32.mrb[0].mxu0
    %v788 = vadd.f32 %v611, %v787
    %v789 = vpop.f32.mrb[0].mxu0
    %v790 = vadd.f32 %v611, %v789
    %791 = vmatprep.mubr.bf16.mxu0 0
    %792 = vmatmul.mubr.bf16.gmra.mrb[0].mxu0 %v668
    %v793 = vpop.f32.mrb[0].mxu0
    %v794 = vadd.f32 %v616, %v793
    %v795 = vpop.f32.mrb[0].mxu0
    %v796 = vadd.f32 %v616, %v795
    %v797 = vpop.f32.mrb[0].mxu0
    %v798 = vadd.f32 %v621, %v797
    %v799 = vpop.f32.mrb[0].mxu0
    %v800 = vadd.f32 %v621, %v799
    %801 = vmatprep.mubr.bf16.mxu0 0
    %802 = vmatmul.mubr.bf16.gmra.mrb[0].mxu0 %v671
    %v803 = vpop.f32.mrb[0].mxu0
    %v804 = vadd.f32 %v626, %v803
    %v805 = vpop.f32.mrb[0].mxu0
    %v806 = vadd.f32 %v626, %v805
    %v807 = vpop.f32.mrb[0].mxu0
    %v808 = vadd.f32 %v631, %v807
    %v809 = vpop.f32.mrb[0].mxu0
    %v810 = vadd.f32 %v631, %v809
    %811 = vmatprep.mubr.bf16.mxu0 0
    %812 = vmatmul.mubr.bf16.gmra.mrb[0].mxu0 %v674
    %v813 = vpop.f32.mrb[0].mxu0
    %v814 = vadd.f32 %v636, %v813
    %v815 = vpop.f32.mrb[0].mxu0
    %v816 = vadd.f32 %v636, %v815
    %v817 = vpop.f32.mrb[0].mxu0
    %v818 = vadd.f32 %v641, %v817
    %v819 = vpop.f32.mrb[0].mxu0
    %v820 = vadd.f32 %v641, %v819
    %821 = vdwg.mxu0
    %822 = vmatprep.subr.bf16.mxu0 %v568
    %823 = vmatpush1.bf16.msra.mxu0 %v567
    %824 = vmatprep.subr.bf16.mxu0 %v576
    %825 = vmatpush1.bf16.msra.mxu0 %v575
    %826 = vmatprep.subr.bf16.mxu0 %v584
    %827 = vmatpush1.bf16.msra.mxu0 %v583
    %828 = vmatprep.subr.bf16.mxu0 %v592
    %829 = vmatpush1.bf16.msra.mxu0 %v591
    %830 = vmatprep.subr.bf16.mxu0 0
    %831 = vmatpush1.bf16.msra.mxu0 0
    %832 = vmatprep.subr.bf16.mxu0 0
    %833 = vmatpush1.bf16.msra.mxu0 0
    %834 = vmatprep.subr.bf16.mxu0 0
    %835 = vmatpush1.bf16.msra.mxu0 0
    %836 = vmatprep.subr.bf16.mxu0 0
    %837 = vmatpush1.bf16.msra.mxu0 0
    %838 = vmatprep.subr.bf16.mxu0 0
    %839 = vmatpush1.bf16.msra.mxu0 0
    %840 = vmatprep.subr.bf16.mxu0 0
    %841 = vmatpush1.bf16.msra.mxu0 0
    %842 = vmatprep.subr.bf16.mxu0 0
    %843 = vmatpush1.bf16.msra.mxu0 0
    %844 = vmatprep.subr.bf16.mxu0 0
    %845 = vmatpush1.bf16.msra.mxu0 0
    %846 = vmatprep.subr.bf16.mxu0 0
    %847 = vmatpush1.bf16.msra.mxu0 0
    %848 = vmatprep.subr.bf16.mxu0 0
    %849 = vmatpush1.bf16.msra.mxu0 0
    %850 = vmatprep.subr.bf16.mxu0 0
    %851 = vmatpush1.bf16.msra.mxu0 0
    %852 = vmatprep.subr.bf16.mxu0 0
    %853 = vmatpush1.bf16.msra.mxu0 0
    %854 = vmatprep.mubr.bf16.mxu0 0
    %855 = vmatmul.mubr.bf16.gmra.mrb[0].mxu0 %v665
    %v856 = vpop.f32.mrb[0].mxu0
    %v857 = vadd.f32 %v606, %v856
    %v858 = vpop.f32.mrb[0].mxu0
    %v859 = vadd.f32 %v606, %v858
    %v860 = vpop.f32.mrb[0].mxu0
    %v861 = vadd.f32 %v611, %v860
    %v862 = vpop.f32.mrb[0].mxu0
    %v863 = vadd.f32 %v611, %v862
    %864 = vmatprep.mubr.bf16.mxu0 0
    %865 = vmatmul.mubr.bf16.gmra.mrb[0].mxu0 %v668
    %v866 = vpop.f32.mrb[0].mxu0
    %v867 = vadd.f32 %v616, %v866
    %v868 = vpop.f32.mrb[0].mxu0
    %v869 = vadd.f32 %v616, %v868
    %v870 = vpop.f32.mrb[0].mxu0
    %v871 = vadd.f32 %v621, %v870
    %v872 = vpop.f32.mrb[0].mxu0
    %v873 = vadd.f32 %v621, %v872
    %874 = vmatprep.mubr.bf16.mxu0 0
    %875 = vmatmul.mubr.bf16.gmra.mrb[0].mxu0 %v671
    %v876 = vpop.f32.mrb[0].mxu0
    %v877 = vadd.f32 %v626, %v876
    %v878 = vpop.f32.mrb[0].mxu0
    %v879 = vadd.f32 %v626, %v878
    %v880 = vpop.f32.mrb[0].mxu0
    %v881 = vadd.f32 %v631, %v880
    %v882 = vpop.f32.mrb[0].mxu0
    %v883 = vadd.f32 %v631, %v882
    %884 = vmatprep.mubr.bf16.mxu0 0
    %885 = vmatmul.mubr.bf16.gmra.mrb[0].mxu0 %v674
    %v886 = vpop.f32.mrb[0].mxu0
    %v887 = vadd.f32 %v636, %v886
    %v888 = vpop.f32.mrb[0].mxu0
    %v889 = vadd.f32 %v636, %v888
    %v890 = vpop.f32.mrb[0].mxu0
    %v891 = vadd.f32 %v641, %v890
    %v892 = vpop.f32.mrb[0].mxu0
    %v893 = vadd.f32 %v641, %v892
    %894 = vdwg.mxu0
    %895 = vmatprep.subr.bf16.mxu0 %v570
    %896 = vmatpush1.bf16.msra.mxu0 %v569
    %897 = vmatprep.subr.bf16.mxu0 %v578
    %898 = vmatpush1.bf16.msra.mxu0 %v577
    %899 = vmatprep.subr.bf16.mxu0 %v586
    %900 = vmatpush1.bf16.msra.mxu0 %v585
    %901 = vmatprep.subr.bf16.mxu0 %v594
    %902 = vmatpush1.bf16.msra.mxu0 %v593
    %903 = vmatprep.subr.bf16.mxu0 0
    %904 = vmatpush1.bf16.msra.mxu0 0
    %905 = vmatprep.subr.bf16.mxu0 0
    %906 = vmatpush1.bf16.msra.mxu0 0
    %907 = vmatprep.subr.bf16.mxu0 0
    %908 = vmatpush1.bf16.msra.mxu0 0
    %909 = vmatprep.subr.bf16.mxu0 0
    %910 = vmatpush1.bf16.msra.mxu0 0
    %911 = vmatprep.subr.bf16.mxu0 0
    %912 = vmatpush1.bf16.msra.mxu0 0
    %913 = vmatprep.subr.bf16.mxu0 0
    %914 = vmatpush1.bf16.msra.mxu0 0
    %915 = vmatprep.subr.bf16.mxu0 0
    %916 = vmatpush1.bf16.msra.mxu0 0
    %917 = vmatprep.subr.bf16.mxu0 0
    %918 = vmatpush1.bf16.msra.mxu0 0
    %919 = vmatprep.subr.bf16.mxu0 0
    %920 = vmatpush1.bf16.msra.mxu0 0
    %921 = vmatprep.subr.bf16.mxu0 0
    %922 = vmatpush1.bf16.msra.mxu0 0
    %923 = vmatprep.subr.bf16.mxu0 0
    %924 = vmatpush1.bf16.msra.mxu0 0
    %925 = vmatprep.subr.bf16.mxu0 0
    %926 = vmatpush1.bf16.msra.mxu0 0
    %927 = vmatprep.mubr.bf16.mxu0 0
    %928 = vmatmul.mubr.bf16.gmra.mrb[0].mxu0 %v665
    %v929 = vpop.f32.mrb[0].mxu0
    %v930 = vadd.f32 %v606, %v929
    %v931 = vpop.f32.mrb[0].mxu0
    %v932 = vadd.f32 %v606, %v931
    %v933 = vpop.f32.mrb[0].mxu0
    %v934 = vadd.f32 %v611, %v933
    %v935 = vpop.f32.mrb[0].mxu0
    %v936 = vadd.f32 %v611, %v935
    %937 = vmatprep.mubr.bf16.mxu0 0
    %938 = vmatmul.mubr.bf16.gmra.mrb[0].mxu0 %v668
    %v939 = vpop.f32.mrb[0].mxu0
    %v940 = vadd.f32 %v616, %v939
    %v941 = vpop.f32.mrb[0].mxu0
    %v942 = vadd.f32 %v616, %v941
    %v943 = vpop.f32.mrb[0].mxu0
    %v944 = vadd.f32 %v621, %v943
    %v945 = vpop.f32.mrb[0].mxu0
    %v946 = vadd.f32 %v621, %v945
    %947 = vmatprep.mubr.bf16.mxu0 0
    %948 = vmatmul.mubr.bf16.gmra.mrb[0].mxu0 %v671
    %v949 = vpop.f32.mrb[0].mxu0
    %v950 = vadd.f32 %v626, %v949
    %v951 = vpop.f32.mrb[0].mxu0
    %v952 = vadd.f32 %v626, %v951
    %v953 = vpop.f32.mrb[0].mxu0
    %v954 = vadd.f32 %v631, %v953
    %v955 = vpop.f32.mrb[0].mxu0
    %v956 = vadd.f32 %v631, %v955
    %957 = vmatprep.mubr.bf16.mxu0 0
    %958 = vmatmul.mubr.bf16.gmra.mrb[0].mxu0 %v674
    %v959 = vpop.f32.mrb[0].mxu0
    %v960 = vadd.f32 %v636, %v959
    %v961 = vpop.f32.mrb[0].mxu0
    %v962 = vadd.f32 %v636, %v961
    %v963 = vpop.f32.mrb[0].mxu0
    %v964 = vadd.f32 %v641, %v963
    %v965 = vpop.f32.mrb[0].mxu0
    %v966 = vadd.f32 %v641, %v965
    %967 = vdwg.mxu0
    %v968 = vmax.f32 %v711, 0.0
    %v969 = vmax.f32 %v713, 0.0
    %v970 = vmax.f32 %v784, 0.0
    %v971 = vmax.f32 %v786, 0.0
    %v972 = vmax.f32 %v857, 0.0
    %v973 = vmax.f32 %v859, 0.0
    %v974 = vmax.f32 %v930, 0.0
    %v975 = vmax.f32 %v932, 0.0
    %v976 = vmax.f32 %v715, 0.0
    %v977 = vmax.f32 %v717, 0.0
    %v978 = vmax.f32 %v788, 0.0
    %v979 = vmax.f32 %v790, 0.0
    %v980 = vmax.f32 %v861, 0.0
    %v981 = vmax.f32 %v863, 0.0
    %v982 = vmax.f32 %v934, 0.0
    %v983 = vmax.f32 %v936, 0.0
    %v984 = vmax.f32 %v721, 0.0
    %v985 = vmax.f32 %v723, 0.0
    %v986 = vmax.f32 %v794, 0.0
    %v987 = vmax.f32 %v796, 0.0
    %v988 = vmax.f32 %v867, 0.0
    %v989 = vmax.f32 %v869, 0.0
    %v990 = vmax.f32 %v940, 0.0
    %v991 = vmax.f32 %v942, 0.0
    %v992 = vmax.f32 %v725, 0.0
    %v993 = vmax.f32 %v727, 0.0
    %v994 = vmax.f32 %v798, 0.0
    %v995 = vmax.f32 %v800, 0.0
    %v996 = vmax.f32 %v871, 0.0
    %v997 = vmax.f32 %v873, 0.0
    %v998 = vmax.f32 %v944, 0.0
    %v999 = vmax.f32 %v946, 0.0
    %v1000 = vmax.f32 %v731, 0.0
    %v1001 = vmax.f32 %v733, 0.0
    %v1002 = vmax.f32 %v804, 0.0
    %v1003 = vmax.f32 %v806, 0.0
    %v1004 = vmax.f32 %v877, 0.0
    %v1005 = vmax.f32 %v879, 0.0
    %v1006 = vmax.f32 %v950, 0.0
    %v1007 = vmax.f32 %v952, 0.0
    %v1008 = vmax.f32 %v735, 0.0
    %v1009 = vmax.f32 %v737, 0.0
    %v1010 = vmax.f32 %v808, 0.0
    %v1011 = vmax.f32 %v810, 0.0
    %v1012 = vmax.f32 %v881, 0.0
    %v1013 = vmax.f32 %v883, 0.0
    %v1014 = vmax.f32 %v954, 0.0
    %v1015 = vmax.f32 %v956, 0.0
    %v1016 = vmax.f32 %v741, 0.0
    %v1017 = vmax.f32 %v743, 0.0
    %v1018 = vmax.f32 %v814, 0.0
    %v1019 = vmax.f32 %v816, 0.0
    %v1020 = vmax.f32 %v887, 0.0
    %v1021 = vmax.f32 %v889, 0.0
    %v1022 = vmax.f32 %v960, 0.0
    %v1023 = vmax.f32 %v962, 0.0
    %v1024 = vmax.f32 %v745, 0.0
    %v1025 = vmax.f32 %v747, 0.0
    %v1026 = vmax.f32 %v818, 0.0
    %v1027 = vmax.f32 %v820, 0.0
    %v1028 = vmax.f32 %v891, 0.0
    %v1029 = vmax.f32 %v893, 0.0
    %v1030 = vmax.f32 %v964, 0.0
    %v1031 = vmax.f32 %v966, 0.0
    %v1032 = vld [vmem:[%s5] sm:$0xf]
    %v1033 = vld [vmem:[%s5 + $0x4] sm:$0xf]
    %v1034 = vld [vmem:[%s5 + $0x8] sm:$0xf]
    %v1035 = vld [vmem:[%s5 + $0xc] sm:$0xf]
    %v1036 = vpack.c.bf16 %v976, %v968
    %v1037 = vpack.c.bf16 %v977, %v969
    %v1038 = vpack.c.bf16 %v978, %v970
    %v1039 = vpack.c.bf16 %v979, %v971
    %v1040 = vpack.c.bf16 %v980, %v972
    %v1041 = vpack.c.bf16 %v981, %v973
    %v1042 = vpack.c.bf16 %v982, %v974
    %v1043 = vpack.c.bf16 %v983, %v975
    %v1044 = vpack.c.bf16 %v992, %v984
    %v1045 = vpack.c.bf16 %v993, %v985
    %v1046 = vpack.c.bf16 %v994, %v986
    %v1047 = vpack.c.bf16 %v995, %v987
    %v1048 = vpack.c.bf16 %v996, %v988
    %v1049 = vpack.c.bf16 %v997, %v989
    %v1050 = vpack.c.bf16 %v998, %v990
    %v1051 = vpack.c.bf16 %v999, %v991
    %v1052 = vpack.c.bf16 %v1008, %v1000
    %v1053 = vpack.c.bf16 %v1009, %v1001
    %v1054 = vpack.c.bf16 %v1010, %v1002
    %v1055 = vpack.c.bf16 %v1011, %v1003
    %v1056 = vpack.c.bf16 %v1012, %v1004
    %v1057 = vpack.c.bf16 %v1013, %v1005
    %v1058 = vpack.c.bf16 %v1014, %v1006
    %v1059 = vpack.c.bf16 %v1015, %v1007
    %v1060 = vpack.c.bf16 %v1024, %v1016
    %v1061 = vpack.c.bf16 %v1025, %v1017
    %v1062 = vpack.c.bf16 %v1026, %v1018
    %v1063 = vpack.c.bf16 %v1027, %v1019
    %v1064 = vpack.c.bf16 %v1028, %v1020
    %v1065 = vpack.c.bf16 %v1029, %v1021
    %v1066 = vpack.c.bf16 %v1030, %v1022
    %v1067 = vpack.c.bf16 %v1031, %v1023
    %v1068 = vld [vmem:[%s6] sm:$0xff]
    %v1069 = vld [vmem:[%s6 + $0x8] sm:$0xff]
    %v1070 = vld [vmem:[%s6 + $0x10] sm:$0xff]
    %v1071 = vld [vmem:[%s6 + $0x18] sm:$0xff]
    %1073 = vset.pattern.permute.xlu0 0
    %1074 = vperm.xlu0 %1073, %v1068
    %v1075 = vpop.permute.xlu0 %1074
    %1078 = vset.pattern.permute.xlu0 0
    %1079 = vperm.xlu0 %1078, %v1069
    %v1080 = vpop.permute.xlu0 %1079
    %1083 = vset.pattern.permute.xlu0 0
    %1084 = vperm.xlu0 %1083, %v1070
    %v1085 = vpop.permute.xlu0 %1084
    %1088 = vset.pattern.permute.xlu0 0
    %1089 = vperm.xlu0 %1088, %v1071
    %v1090 = vpop.permute.xlu0 %1089
    %v1096 = vunpack.c.l.b16 %v1032
    %v1097 = vunpack.c.l.b16 %v1033
    %v1098 = vunpack.c.l.b16 %v1034
    %v1099 = vunpack.c.l.b16 %v1035
    %v1100 = vpack.c.b16 %v1097, %v1096
    %v1101 = vpack.c.b16 %v1099, %v1098
    %v1103 = vsel %vm663, %v1100, 0
    %v1106 = vsel %vm663, %v1101, 0
    %1108 = vmatprep.subr.bf16.mxu0 %v1037
    %1109 = vmatpush1.bf16.msra.mxu0 %v1036
    %1110 = vmatprep.subr.bf16.mxu0 %v1045
    %1111 = vmatpush1.bf16.msra.mxu0 %v1044
    %1112 = vmatprep.subr.bf16.mxu0 %v1053
    %1113 = vmatpush1.bf16.msra.mxu0 %v1052
    %1114 = vmatprep.subr.bf16.mxu0 %v1061
    %1115 = vmatpush1.bf16.msra.mxu0 %v1060
    %1116 = vmatprep.subr.bf16.mxu0 0
    %1117 = vmatpush1.bf16.msra.mxu0 0
    %1118 = vmatprep.subr.bf16.mxu0 0
    %1119 = vmatpush1.bf16.msra.mxu0 0
    %1120 = vmatprep.subr.bf16.mxu0 0
    %1121 = vmatpush1.bf16.msra.mxu0 0
    %1122 = vmatprep.subr.bf16.mxu0 0
    %1123 = vmatpush1.bf16.msra.mxu0 0
    %1124 = vmatprep.subr.bf16.mxu0 0
    %1125 = vmatpush1.bf16.msra.mxu0 0
    %1126 = vmatprep.subr.bf16.mxu0 0
    %1127 = vmatpush1.bf16.msra.mxu0 0
    %1128 = vmatprep.subr.bf16.mxu0 0
    %1129 = vmatpush1.bf16.msra.mxu0 0
    %1130 = vmatprep.subr.bf16.mxu0 0
    %1131 = vmatpush1.bf16.msra.mxu0 0
    %1132 = vmatprep.subr.bf16.mxu0 0
    %1133 = vmatpush1.bf16.msra.mxu0 0
    %1134 = vmatprep.subr.bf16.mxu0 0
    %1135 = vmatpush1.bf16.msra.mxu0 0
    %1136 = vmatprep.subr.bf16.mxu0 0
    %1137 = vmatpush1.bf16.msra.mxu0 0
    %1138 = vmatprep.subr.bf16.mxu0 0
    %1139 = vmatpush1.bf16.msra.mxu0 0
    %1140 = vmatprep.mubr.bf16.mxu0 0
    %1141 = vmatmul.mubr.bf16.gmra.mrb[0].mxu0 %v1103
    %v1142 = vpop.f32.mrb[0].mxu0
    %v1143 = vadd.f32 %v1075, %v1142
    %v1144 = vpop.f32.mrb[0].mxu0
    %v1145 = vadd.f32 %v1075, %v1144
    %v1146 = vpop.f32.mrb[0].mxu0
    %v1147 = vadd.f32 %v1080, %v1146
    %v1148 = vpop.f32.mrb[0].mxu0
    %v1149 = vadd.f32 %v1080, %v1148
    %1150 = vmatprep.mubr.bf16.mxu0 0
    %1151 = vmatmul.mubr.bf16.gmra.mrb[0].mxu0 %v1106
    %v1152 = vpop.f32.mrb[0].mxu0
    %v1153 = vadd.f32 %v1085, %v1152
    %v1154 = vpop.f32.mrb[0].mxu0
    %v1155 = vadd.f32 %v1085, %v1154
    %v1156 = vpop.f32.mrb[0].mxu0
    %v1157 = vadd.f32 %v1090, %v1156
    %v1158 = vpop.f32.mrb[0].mxu0
    %v1159 = vadd.f32 %v1090, %v1158
    %1160 = vdwg.mxu0
    %1161 = vmatprep.subr.bf16.mxu0 %v1039
    %1162 = vmatpush1.bf16.msra.mxu0 %v1038
    %1163 = vmatprep.subr.bf16.mxu0 %v1047
    %1164 = vmatpush1.bf16.msra.mxu0 %v1046
    %1165 = vmatprep.subr.bf16.mxu0 %v1055
    %1166 = vmatpush1.bf16.msra.mxu0 %v1054
    %1167 = vmatprep.subr.bf16.mxu0 %v1063
    %1168 = vmatpush1.bf16.msra.mxu0 %v1062
    %1169 = vmatprep.subr.bf16.mxu0 0
    %1170 = vmatpush1.bf16.msra.mxu0 0
    %1171 = vmatprep.subr.bf16.mxu0 0
    %1172 = vmatpush1.bf16.msra.mxu0 0
    %1173 = vmatprep.subr.bf16.mxu0 0
    %1174 = vmatpush1.bf16.msra.mxu0 0
    %1175 = vmatprep.subr.bf16.mxu0 0
    %1176 = vmatpush1.bf16.msra.mxu0 0
    %1177 = vmatprep.subr.bf16.mxu0 0
    %1178 = vmatpush1.bf16.msra.mxu0 0
    %1179 = vmatprep.subr.bf16.mxu0 0
    %1180 = vmatpush1.bf16.msra.mxu0 0
    %1181 = vmatprep.subr.bf16.mxu0 0
    %1182 = vmatpush1.bf16.msra.mxu0 0
    %1183 = vmatprep.subr.bf16.mxu0 0
    %1184 = vmatpush1.bf16.msra.mxu0 0
    %1185 = vmatprep.subr.bf16.mxu0 0
    %1186 = vmatpush1.bf16.msra.mxu0 0
    %1187 = vmatprep.subr.bf16.mxu0 0
    %1188 = vmatpush1.bf16.msra.mxu0 0
    %1189 = vmatprep.subr.bf16.mxu0 0
    %1190 = vmatpush1.bf16.msra.mxu0 0
    %1191 = vmatprep.subr.bf16.mxu0 0
    %1192 = vmatpush1.bf16.msra.mxu0 0
    %1193 = vmatprep.mubr.bf16.mxu0 0
    %1194 = vmatmul.mubr.bf16.gmra.mrb[0].mxu0 %v1103
    %v1195 = vpop.f32.mrb[0].mxu0
    %v1196 = vadd.f32 %v1075, %v1195
    %v1197 = vpop.f32.mrb[0].mxu0
    %v1198 = vadd.f32 %v1075, %v1197
    %v1199 = vpop.f32.mrb[0].mxu0
    %v1200 = vadd.f32 %v1080, %v1199
    %v1201 = vpop.f32.mrb[0].mxu0
    %v1202 = vadd.f32 %v1080, %v1201
    %1203 = vmatprep.mubr.bf16.mxu0 0
    %1204 = vmatmul.mubr.bf16.gmra.mrb[0].mxu0 %v1106
    %v1205 = vpop.f32.mrb[0].mxu0
    %v1206 = vadd.f32 %v1085, %v1205
    %v1207 = vpop.f32.mrb[0].mxu0
    %v1208 = vadd.f32 %v1085, %v1207
    %v1209 = vpop.f32.mrb[0].mxu0
    %v1210 = vadd.f32 %v1090, %v1209
    %v1211 = vpop.f32.mrb[0].mxu0
    %v1212 = vadd.f32 %v1090, %v1211
    %1213 = vdwg.mxu0
    %1214 = vmatprep.subr.bf16.mxu0 %v1041
    %1215 = vmatpush1.bf16.msra.mxu0 %v1040
    %1216 = vmatprep.subr.bf16.mxu0 %v1049
    %1217 = vmatpush1.bf16.msra.mxu0 %v1048
    %1218 = vmatprep.subr.bf16.mxu0 %v1057
    %1219 = vmatpush1.bf16.msra.mxu0 %v1056
    %1220 = vmatprep.subr.bf16.mxu0 %v1065
    %1221 = vmatpush1.bf16.msra.mxu0 %v1064
    %1222 = vmatprep.subr.bf16.mxu0 0
    %1223 = vmatpush1.bf16.msra.mxu0 0
    %1224 = vmatprep.subr.bf16.mxu0 0
    %1225 = vmatpush1.bf16.msra.mxu0 0
    %1226 = vmatprep.subr.bf16.mxu0 0
    %1227 = vmatpush1.bf16.msra.mxu0 0
    %1228 = vmatprep.subr.bf16.mxu0 0
    %1229 = vmatpush1.bf16.msra.mxu0 0
    %1230 = vmatprep.subr.bf16.mxu0 0
    %1231 = vmatpush1.bf16.msra.mxu0 0
    %1232 = vmatprep.subr.bf16.mxu0 0
    %1233 = vmatpush1.bf16.msra.mxu0 0
    %1234 = vmatprep.subr.bf16.mxu0 0
    %1235 = vmatpush1.bf16.msra.mxu0 0
    %1236 = vmatprep.subr.bf16.mxu0 0
    %1237 = vmatpush1.bf16.msra.mxu0 0
    %1238 = vmatprep.subr.bf16.mxu0 0
    %1239 = vmatpush1.bf16.msra.mxu0 0
    %1240 = vmatprep.subr.bf16.mxu0 0
    %1241 = vmatpush1.bf16.msra.mxu0 0
    %1242 = vmatprep.subr.bf16.mxu0 0
    %1243 = vmatpush1.bf16.msra.mxu0 0
    %1244 = vmatprep.subr.bf16.mxu0 0
    %1245 = vmatpush1.bf16.msra.mxu0 0
    %1246 = vmatprep.mubr.bf16.mxu0 0
    %1247 = vmatmul.mubr.bf16.gmra.mrb[0].mxu0 %v1103
    %v1248 = vpop.f32.mrb[0].mxu0
    %v1249 = vadd.f32 %v1075, %v1248
    %v1250 = vpop.f32.mrb[0].mxu0
    %v1251 = vadd.f32 %v1075, %v1250
    %v1252 = vpop.f32.mrb[0].mxu0
    %v1253 = vadd.f32 %v1080, %v1252
    %v1254 = vpop.f32.mrb[0].mxu0
    %v1255 = vadd.f32 %v1080, %v1254
    %1256 = vmatprep.mubr.bf16.mxu0 0
    %1257 = vmatmul.mubr.bf16.gmra.mrb[0].mxu0 %v1106
    %v1258 = vpop.f32.mrb[0].mxu0
    %v1259 = vadd.f32 %v1085, %v1258
    %v1260 = vpop.f32.mrb[0].mxu0
    %v1261 = vadd.f32 %v1085, %v1260
    %v1262 = vpop.f32.mrb[0].mxu0
    %v1263 = vadd.f32 %v1090, %v1262
    %v1264 = vpop.f32.mrb[0].mxu0
    %v1265 = vadd.f32 %v1090, %v1264
    %1266 = vdwg.mxu0
    %1267 = vmatprep.subr.bf16.mxu0 %v1043
    %1268 = vmatpush1.bf16.msra.mxu0 %v1042
    %1269 = vmatprep.subr.bf16.mxu0 %v1051
    %1270 = vmatpush1.bf16.msra.mxu0 %v1050
    %1271 = vmatprep.subr.bf16.mxu0 %v1059
    %1272 = vmatpush1.bf16.msra.mxu0 %v1058
    %1273 = vmatprep.subr.bf16.mxu0 %v1067
    %1274 = vmatpush1.bf16.msra.mxu0 %v1066
    %1275 = vmatprep.subr.bf16.mxu0 0
    %1276 = vmatpush1.bf16.msra.mxu0 0
    %1277 = vmatprep.subr.bf16.mxu0 0
    %1278 = vmatpush1.bf16.msra.mxu0 0
    %1279 = vmatprep.subr.bf16.mxu0 0
    %1280 = vmatpush1.bf16.msra.mxu0 0
    %1281 = vmatprep.subr.bf16.mxu0 0
    %1282 = vmatpush1.bf16.msra.mxu0 0
    %1283 = vmatprep.subr.bf16.mxu0 0
    %1284 = vmatpush1.bf16.msra.mxu0 0
    %1285 = vmatprep.subr.bf16.mxu0 0
    %1286 = vmatpush1.bf16.msra.mxu0 0
    %1287 = vmatprep.subr.bf16.mxu0 0
    %1288 = vmatpush1.bf16.msra.mxu0 0
    %1289 = vmatprep.subr.bf16.mxu0 0
    %1290 = vmatpush1.bf16.msra.mxu0 0
    %1291 = vmatprep.subr.bf16.mxu0 0
    %1292 = vmatpush1.bf16.msra.mxu0 0
    %1293 = vmatprep.subr.bf16.mxu0 0
    %1294 = vmatpush1.bf16.msra.mxu0 0
    %1295 = vmatprep.subr.bf16.mxu0 0
    %1296 = vmatpush1.bf16.msra.mxu0 0
    %1297 = vmatprep.subr.bf16.mxu0 0
    %1298 = vmatpush1.bf16.msra.mxu0 0
    %1299 = vmatprep.mubr.bf16.mxu0 0
    %1300 = vmatmul.mubr.bf16.gmra.mrb[0].mxu0 %v1103
    %v1301 = vpop.f32.mrb[0].mxu0
    %v1302 = vadd.f32 %v1075, %v1301
    %v1303 = vpop.f32.mrb[0].mxu0
    %v1304 = vadd.f32 %v1075, %v1303
    %v1305 = vpop.f32.mrb[0].mxu0
    %v1306 = vadd.f32 %v1080, %v1305
    %v1307 = vpop.f32.mrb[0].mxu0
    %v1308 = vadd.f32 %v1080, %v1307
    %1309 = vmatprep.mubr.bf16.mxu0 0
    %1310 = vmatmul.mubr.bf16.gmra.mrb[0].mxu0 %v1106
    %v1311 = vpop.f32.mrb[0].mxu0
    %v1312 = vadd.f32 %v1085, %v1311
    %v1313 = vpop.f32.mrb[0].mxu0
    %v1314 = vadd.f32 %v1085, %v1313
    %v1315 = vpop.f32.mrb[0].mxu0
    %v1316 = vadd.f32 %v1090, %v1315
    %v1317 = vpop.f32.mrb[0].mxu0
    %v1318 = vadd.f32 %v1090, %v1317
    %1319 = vdwg.mxu0
    %v1320 = vmax.f32 %v1143, 0.0
    %v1321 = vmax.f32 %v1145, 0.0
    %v1322 = vmax.f32 %v1196, 0.0
    %v1323 = vmax.f32 %v1198, 0.0
    %v1324 = vmax.f32 %v1249, 0.0
    %v1325 = vmax.f32 %v1251, 0.0
    %v1326 = vmax.f32 %v1302, 0.0
    %v1327 = vmax.f32 %v1304, 0.0
    %v1328 = vmax.f32 %v1147, 0.0
    %v1329 = vmax.f32 %v1149, 0.0
    %v1330 = vmax.f32 %v1200, 0.0
    %v1331 = vmax.f32 %v1202, 0.0
    %v1332 = vmax.f32 %v1253, 0.0
    %v1333 = vmax.f32 %v1255, 0.0
    %v1334 = vmax.f32 %v1306, 0.0
    %v1335 = vmax.f32 %v1308, 0.0
    %v1336 = vmax.f32 %v1153, 0.0
    %v1337 = vmax.f32 %v1155, 0.0
    %v1338 = vmax.f32 %v1206, 0.0
    %v1339 = vmax.f32 %v1208, 0.0
    %v1340 = vmax.f32 %v1259, 0.0
    %v1341 = vmax.f32 %v1261, 0.0
    %v1342 = vmax.f32 %v1312, 0.0
    %v1343 = vmax.f32 %v1314, 0.0
    %v1344 = vmax.f32 %v1157, 0.0
    %v1345 = vmax.f32 %v1159, 0.0
    %v1346 = vmax.f32 %v1210, 0.0
    %v1347 = vmax.f32 %v1212, 0.0
    %v1348 = vmax.f32 %v1263, 0.0
    %v1349 = vmax.f32 %v1265, 0.0
    %v1350 = vmax.f32 %v1316, 0.0
    %v1351 = vmax.f32 %v1318, 0.0
    %v1352 = vld [vmem:[#allocation3] sm:$0xf]
    %v1353 = vld [vmem:[#allocation3 + $0x4] sm:$0xf]
    %v1354 = vld [vmem:[#allocation3 + $0x8] sm:$0xf]
    %v1355 = vld [vmem:[#allocation3 + $0xc] sm:$0xf]
    %v1356 = vpack.c.bf16 %v1328, %v1320
    %v1357 = vpack.c.bf16 %v1329, %v1321
    %v1358 = vpack.c.bf16 %v1330, %v1322
    %v1359 = vpack.c.bf16 %v1331, %v1323
    %v1360 = vpack.c.bf16 %v1332, %v1324
    %v1361 = vpack.c.bf16 %v1333, %v1325
    %v1362 = vpack.c.bf16 %v1334, %v1326
    %v1363 = vpack.c.bf16 %v1335, %v1327
    %v1364 = vpack.c.bf16 %v1344, %v1336
    %v1365 = vpack.c.bf16 %v1345, %v1337
    %v1366 = vpack.c.bf16 %v1346, %v1338
    %v1367 = vpack.c.bf16 %v1347, %v1339
    %v1368 = vpack.c.bf16 %v1348, %v1340
    %v1369 = vpack.c.bf16 %v1349, %v1341
    %v1370 = vpack.c.bf16 %v1350, %v1342
    %v1371 = vpack.c.bf16 %v1351, %v1343
    %v1372 = vld [vmem:[%s8] sm:$0xff]
    %v1373 = vld [vmem:[%s8 + $0x8] sm:$0xff]
    %v1374 = vld [vmem:[%s8 + $0x10] sm:$0xff]
    %v1375 = vld [vmem:[%s8 + $0x18] sm:$0xff]
    %1377 = vset.pattern.permute.xlu0 0
    %1378 = vperm.xlu0 %1377, %v1372
    %v1379 = vpop.permute.xlu0 %1378
    %1382 = vset.pattern.permute.xlu0 0
    %1383 = vperm.xlu0 %1382, %v1373
    %v1384 = vpop.permute.xlu0 %1383
    %1387 = vset.pattern.permute.xlu0 0
    %1388 = vperm.xlu0 %1387, %v1374
    %v1389 = vpop.permute.xlu0 %1388
    %1392 = vset.pattern.permute.xlu0 0
    %1393 = vperm.xlu0 %1392, %v1375
    %v1394 = vpop.permute.xlu0 %1393
    %v1400 = vunpack.c.l.b16 %v1352
    %v1401 = vunpack.c.l.b16 %v1353
    %v1402 = vunpack.c.l.b16 %v1354
    %v1403 = vunpack.c.l.b16 %v1355
    %v1404 = vpack.c.b16 %v1401, %v1400
    %v1405 = vpack.c.b16 %v1403, %v1402
    %v1407 = vsel %vm186, %v1404, 0
    %v1410 = vsel %vm186, %v1405, 0
    %1412 = vmatprep.subr.bf16.mxu0 %v1357
    %1413 = vmatpush1.bf16.msra.mxu0 %v1356
    %1414 = vmatprep.subr.bf16.mxu0 %v1365
    %1415 = vmatpush1.bf16.msra.mxu0 %v1364
    %1416 = vmatprep.subr.bf16.mxu0 0
    %1417 = vmatpush1.bf16.msra.mxu0 0
    %1418 = vmatprep.subr.bf16.mxu0 0
    %1419 = vmatpush1.bf16.msra.mxu0 0
    %1420 = vmatprep.subr.bf16.mxu0 0
    %1421 = vmatpush1.bf16.msra.mxu0 0
    %1422 = vmatprep.subr.bf16.mxu0 0
    %1423 = vmatpush1.bf16.msra.mxu0 0
    %1424 = vmatprep.subr.bf16.mxu0 0
    %1425 = vmatpush1.bf16.msra.mxu0 0
    %1426 = vmatprep.subr.bf16.mxu0 0
    %1427 = vmatpush1.bf16.msra.mxu0 0
    %1428 = vmatprep.subr.bf16.mxu0 0
    %1429 = vmatpush1.bf16.msra.mxu0 0
    %1430 = vmatprep.subr.bf16.mxu0 0
    %1431 = vmatpush1.bf16.msra.mxu0 0
    %1432 = vmatprep.subr.bf16.mxu0 0
    %1433 = vmatpush1.bf16.msra.mxu0 0
    %1434 = vmatprep.subr.bf16.mxu0 0
    %1435 = vmatpush1.bf16.msra.mxu0 0
    %1436 = vmatprep.subr.bf16.mxu0 0
    %1437 = vmatpush1.bf16.msra.mxu0 0
    %1438 = vmatprep.subr.bf16.mxu0 0
    %1439 = vmatpush1.bf16.msra.mxu0 0
    %1440 = vmatprep.subr.bf16.mxu0 0
    %1441 = vmatpush1.bf16.msra.mxu0 0
    %1442 = vmatprep.subr.bf16.mxu0 0
    %1443 = vmatpush1.bf16.msra.mxu0 0
    %1444 = vmatprep.mubr.bf16.mxu0 0
    %1445 = vmatmul.mubr.bf16.gmra.mrb[0].mxu0 %v1407
    %v1446 = vpop.f32.mrb[0].mxu0
    %v1447 = vadd.f32 %v1379, %v1446
    %v1448 = vpop.f32.mrb[0].mxu0
    %v1449 = vadd.f32 %v1379, %v1448
    %v1450 = vpop.f32.mrb[0].mxu0
    %v1451 = vadd.f32 %v1384, %v1450
    %v1452 = vpop.f32.mrb[0].mxu0
    %v1453 = vadd.f32 %v1384, %v1452
    %1454 = vmatprep.mubr.bf16.mxu0 0
    %1455 = vmatmul.mubr.bf16.gmra.mrb[0].mxu0 %v1410
    %v1456 = vpop.f32.mrb[0].mxu0
    %v1457 = vadd.f32 %v1389, %v1456
    %v1458 = vpop.f32.mrb[0].mxu0
    %v1459 = vadd.f32 %v1389, %v1458
    %v1460 = vpop.f32.mrb[0].mxu0
    %v1461 = vadd.f32 %v1394, %v1460
    %v1462 = vpop.f32.mrb[0].mxu0
    %v1463 = vadd.f32 %v1394, %v1462
    %1464 = vdwg.mxu0
    %1465 = vmatprep.subr.bf16.mxu0 %v1359
    %1466 = vmatpush1.bf16.msra.mxu0 %v1358
    %1467 = vmatprep.subr.bf16.mxu0 %v1367
    %1468 = vmatpush1.bf16.msra.mxu0 %v1366
    %1469 = vmatprep.subr.bf16.mxu0 0
    %1470 = vmatpush1.bf16.msra.mxu0 0
    %1471 = vmatprep.subr.bf16.mxu0 0
    %1472 = vmatpush1.bf16.msra.mxu0 0
    %1473 = vmatprep.subr.bf16.mxu0 0
    %1474 = vmatpush1.bf16.msra.mxu0 0
    %1475 = vmatprep.subr.bf16.mxu0 0
    %1476 = vmatpush1.bf16.msra.mxu0 0
    %1477 = vmatprep.subr.bf16.mxu0 0
    %1478 = vmatpush1.bf16.msra.mxu0 0
    %1479 = vmatprep.subr.bf16.mxu0 0
    %1480 = vmatpush1.bf16.msra.mxu0 0
    %1481 = vmatprep.subr.bf16.mxu0 0
    %1482 = vmatpush1.bf16.msra.mxu0 0
    %1483 = vmatprep.subr.bf16.mxu0 0
    %1484 = vmatpush1.bf16.msra.mxu0 0
    %1485 = vmatprep.subr.bf16.mxu0 0
    %1486 = vmatpush1.bf16.msra.mxu0 0
    %1487 = vmatprep.subr.bf16.mxu0 0
    %1488 = vmatpush1.bf16.msra.mxu0 0
    %1489 = vmatprep.subr.bf16.mxu0 0
    %1490 = vmatpush1.bf16.msra.mxu0 0
    %1491 = vmatprep.subr.bf16.mxu0 0
    %1492 = vmatpush1.bf16.msra.mxu0 0
    %1493 = vmatprep.subr.bf16.mxu0 0
    %1494 = vmatpush1.bf16.msra.mxu0 0
    %1495 = vmatprep.subr.bf16.mxu0 0
    %1496 = vmatpush1.bf16.msra.mxu0 0
    %1497 = vmatprep.mubr.bf16.mxu0 0
    %1498 = vmatmul.mubr.bf16.gmra.mrb[0].mxu0 %v1407
    %v1499 = vpop.f32.mrb[0].mxu0
    %v1500 = vadd.f32 %v1379, %v1499
    %v1501 = vpop.f32.mrb[0].mxu0
    %v1502 = vadd.f32 %v1379, %v1501
    %v1503 = vpop.f32.mrb[0].mxu0
    %v1504 = vadd.f32 %v1384, %v1503
    %v1505 = vpop.f32.mrb[0].mxu0
    %v1506 = vadd.f32 %v1384, %v1505
    %1507 = vmatprep.mubr.bf16.mxu0 0
    %1508 = vmatmul.mubr.bf16.gmra.mrb[0].mxu0 %v1410
    %v1509 = vpop.f32.mrb[0].mxu0
    %v1510 = vadd.f32 %v1389, %v1509
    %v1511 = vpop.f32.mrb[0].mxu0
    %v1512 = vadd.f32 %v1389, %v1511
    %v1513 = vpop.f32.mrb[0].mxu0
    %v1514 = vadd.f32 %v1394, %v1513
    %v1515 = vpop.f32.mrb[0].mxu0
    %v1516 = vadd.f32 %v1394, %v1515
    %1517 = vdwg.mxu0
    %1518 = vmatprep.subr.bf16.mxu0 %v1361
    %1519 = vmatpush1.bf16.msra.mxu0 %v1360
    %1520 = vmatprep.subr.bf16.mxu0 %v1369
    %1521 = vmatpush1.bf16.msra.mxu0 %v1368
    %1522 = vmatprep.subr.bf16.mxu0 0
    %1523 = vmatpush1.bf16.msra.mxu0 0
    %1524 = vmatprep.subr.bf16.mxu0 0
    %1525 = vmatpush1.bf16.msra.mxu0 0
    %1526 = vmatprep.subr.bf16.mxu0 0
    %1527 = vmatpush1.bf16.msra.mxu0 0
    %1528 = vmatprep.subr.bf16.mxu0 0
    %1529 = vmatpush1.bf16.msra.mxu0 0
    %1530 = vmatprep.subr.bf16.mxu0 0
    %1531 = vmatpush1.bf16.msra.mxu0 0
    %1532 = vmatprep.subr.bf16.mxu0 0
    %1533 = vmatpush1.bf16.msra.mxu0 0
    %1534 = vmatprep.subr.bf16.mxu0 0
    %1535 = vmatpush1.bf16.msra.mxu0 0
    %1536 = vmatprep.subr.bf16.mxu0 0
    %1537 = vmatpush1.bf16.msra.mxu0 0
    %1538 = vmatprep.subr.bf16.mxu0 0
    %1539 = vmatpush1.bf16.msra.mxu0 0
    %1540 = vmatprep.subr.bf16.mxu0 0
    %1541 = vmatpush1.bf16.msra.mxu0 0
    %1542 = vmatprep.subr.bf16.mxu0 0
    %1543 = vmatpush1.bf16.msra.mxu0 0
    %1544 = vmatprep.subr.bf16.mxu0 0
    %1545 = vmatpush1.bf16.msra.mxu0 0
    %1546 = vmatprep.subr.bf16.mxu0 0
    %1547 = vmatpush1.bf16.msra.mxu0 0
    %1548 = vmatprep.subr.bf16.mxu0 0
    %1549 = vmatpush1.bf16.msra.mxu0 0
    %1550 = vmatprep.mubr.bf16.mxu0 0
    %1551 = vmatmul.mubr.bf16.gmra.mrb[0].mxu0 %v1407
    %v1552 = vpop.f32.mrb[0].mxu0
    %v1553 = vadd.f32 %v1379, %v1552
    %v1554 = vpop.f32.mrb[0].mxu0
    %v1555 = vadd.f32 %v1379, %v1554
    %v1556 = vpop.f32.mrb[0].mxu0
    %v1557 = vadd.f32 %v1384, %v1556
    %v1558 = vpop.f32.mrb[0].mxu0
    %v1559 = vadd.f32 %v1384, %v1558
    %1560 = vmatprep.mubr.bf16.mxu0 0
    %1561 = vmatmul.mubr.bf16.gmra.mrb[0].mxu0 %v1410
    %v1562 = vpop.f32.mrb[0].mxu0
    %v1563 = vadd.f32 %v1389, %v1562
    %v1564 = vpop.f32.mrb[0].mxu0
    %v1565 = vadd.f32 %v1389, %v1564
    %v1566 = vpop.f32.mrb[0].mxu0
    %v1567 = vadd.f32 %v1394, %v1566
    %v1568 = vpop.f32.mrb[0].mxu0
    %v1569 = vadd.f32 %v1394, %v1568
    %1570 = vdwg.mxu0
    %1571 = vmatprep.subr.bf16.mxu0 %v1363
    %1572 = vmatpush1.bf16.msra.mxu0 %v1362
    %1573 = vmatprep.subr.bf16.mxu0 %v1371
    %1574 = vmatpush1.bf16.msra.mxu0 %v1370
    %1575 = vmatprep.subr.bf16.mxu0 0
    %1576 = vmatpush1.bf16.msra.mxu0 0
    %1577 = vmatprep.subr.bf16.mxu0 0
    %1578 = vmatpush1.bf16.msra.mxu0 0
    %1579 = vmatprep.subr.bf16.mxu0 0
    %1580 = vmatpush1.bf16.msra.mxu0 0
    %1581 = vmatprep.subr.bf16.mxu0 0
    %1582 = vmatpush1.bf16.msra.mxu0 0
    %1583 = vmatprep.subr.bf16.mxu0 0
    %1584 = vmatpush1.bf16.msra.mxu0 0
    %1585 = vmatprep.subr.bf16.mxu0 0
    %1586 = vmatpush1.bf16.msra.mxu0 0
    %1587 = vmatprep.subr.bf16.mxu0 0
    %1588 = vmatpush1.bf16.msra.mxu0 0
    %1589 = vmatprep.subr.bf16.mxu0 0
    %1590 = vmatpush1.bf16.msra.mxu0 0
    %1591 = vmatprep.subr.bf16.mxu0 0
    %1592 = vmatpush1.bf16.msra.mxu0 0
    %1593 = vmatprep.subr.bf16.mxu0 0
    %1594 = vmatpush1.bf16.msra.mxu0 0
    %1595 = vmatprep.subr.bf16.mxu0 0
    %1596 = vmatpush1.bf16.msra.mxu0 0
    %1597 = vmatprep.subr.bf16.mxu0 0
    %1598 = vmatpush1.bf16.msra.mxu0 0
    %1599 = vmatprep.subr.bf16.mxu0 0
    %1600 = vmatpush1.bf16.msra.mxu0 0
    %1601 = vmatprep.subr.bf16.mxu0 0
    %1602 = vmatpush1.bf16.msra.mxu0 0
    %1603 = vmatprep.mubr.bf16.mxu0 0
    %1604 = vmatmul.mubr.bf16.gmra.mrb[0].mxu0 %v1407
    %v1605 = vpop.f32.mrb[0].mxu0
    %v1606 = vadd.f32 %v1379, %v1605
    %v1607 = vpop.f32.mrb[0].mxu0
    %v1608 = vadd.f32 %v1379, %v1607
    %v1609 = vpop.f32.mrb[0].mxu0
    %v1610 = vadd.f32 %v1384, %v1609
    %v1611 = vpop.f32.mrb[0].mxu0
    %v1612 = vadd.f32 %v1384, %v1611
    %1613 = vmatprep.mubr.bf16.mxu0 0
    %1614 = vmatmul.mubr.bf16.gmra.mrb[0].mxu0 %v1410
    %v1615 = vpop.f32.mrb[0].mxu0
    %v1616 = vadd.f32 %v1389, %v1615
    %v1617 = vpop.f32.mrb[0].mxu0
    %v1618 = vadd.f32 %v1389, %v1617
    %v1619 = vpop.f32.mrb[0].mxu0
    %v1620 = vadd.f32 %v1394, %v1619
    %v1621 = vpop.f32.mrb[0].mxu0
    %v1622 = vadd.f32 %v1394, %v1621
    %1623 = vdwg.mxu0
    %v1624 = vmax.f32 %v1447, 0.0
    %v1625 = vmax.f32 %v1449, 0.0
    %v1626 = vmax.f32 %v1500, 0.0
    %v1627 = vmax.f32 %v1502, 0.0
    %v1628 = vmax.f32 %v1553, 0.0
    %v1629 = vmax.f32 %v1555, 0.0
    %v1630 = vmax.f32 %v1606, 0.0
    %v1631 = vmax.f32 %v1608, 0.0
    %v1632 = vmax.f32 %v1451, 0.0
    %v1633 = vmax.f32 %v1453, 0.0
    %v1634 = vmax.f32 %v1504, 0.0
    %v1635 = vmax.f32 %v1506, 0.0
    %v1636 = vmax.f32 %v1557, 0.0
    %v1637 = vmax.f32 %v1559, 0.0
    %v1638 = vmax.f32 %v1610, 0.0
    %v1639 = vmax.f32 %v1612, 0.0
    %v1640 = vmax.f32 %v1457, 0.0
    %v1641 = vmax.f32 %v1459, 0.0
    %v1642 = vmax.f32 %v1510, 0.0
    %v1643 = vmax.f32 %v1512, 0.0
    %v1644 = vmax.f32 %v1563, 0.0
    %v1645 = vmax.f32 %v1565, 0.0
    %v1646 = vmax.f32 %v1616, 0.0
    %v1647 = vmax.f32 %v1618, 0.0
    %v1648 = vmax.f32 %v1461, 0.0
    %v1649 = vmax.f32 %v1463, 0.0
    %v1650 = vmax.f32 %v1514, 0.0
    %v1651 = vmax.f32 %v1516, 0.0
    %v1652 = vmax.f32 %v1567, 0.0
    %v1653 = vmax.f32 %v1569, 0.0
    %v1654 = vmax.f32 %v1620, 0.0
    %v1655 = vmax.f32 %v1622, 0.0
    %v1656 = vld [vmem:[%s9] sm:$0xf]
    %v1657 = vld [vmem:[%s9 + $0x4] sm:$0xf]
    %v1658 = vpack.c.bf16 %v1632, %v1624
    %v1659 = vpack.c.bf16 %v1633, %v1625
    %v1660 = vpack.c.bf16 %v1634, %v1626
    %v1661 = vpack.c.bf16 %v1635, %v1627
    %v1662 = vpack.c.bf16 %v1636, %v1628
    %v1663 = vpack.c.bf16 %v1637, %v1629
    %v1664 = vpack.c.bf16 %v1638, %v1630
    %v1665 = vpack.c.bf16 %v1639, %v1631
    %v1666 = vpack.c.bf16 %v1648, %v1640
    %v1667 = vpack.c.bf16 %v1649, %v1641
    %v1668 = vpack.c.bf16 %v1650, %v1642
    %v1669 = vpack.c.bf16 %v1651, %v1643
    %v1670 = vpack.c.bf16 %v1652, %v1644
    %v1671 = vpack.c.bf16 %v1653, %v1645
    %v1672 = vpack.c.bf16 %v1654, %v1646
    %v1673 = vpack.c.bf16 %v1655, %v1647
    %v1674 = vld [vmem:[%s10] sm:$0xff]
    %v1675 = vld [vmem:[%s10 + $0x8] sm:$0xff]
    %1677 = vset.pattern.permute.xlu0 0
    %1678 = vperm.xlu0 %1677, %v1674
    %v1679 = vpop.permute.xlu0 %1678
    %1682 = vset.pattern.permute.xlu0 0
    %1683 = vperm.xlu0 %1682, %v1675
    %v1684 = vpop.permute.xlu0 %1683
    %v1688 = vunpack.c.l.b16 %v1656
    %v1689 = vunpack.c.l.b16 %v1657
    %v1690 = vpack.c.b16 %v1689, %v1688
    %v1692 = vsel %vm186, %v1690, 0
    %1694 = vmatprep.subr.bf16.mxu0 %v1659
    %1695 = vmatpush1.bf16.msra.mxu0 %v1658
    %1696 = vmatprep.subr.bf16.mxu0 %v1667
    %1697 = vmatpush1.bf16.msra.mxu0 %v1666
    %1698 = vmatprep.subr.bf16.mxu0 0
    %1699 = vmatpush1.bf16.msra.mxu0 0
    %1700 = vmatprep.subr.bf16.mxu0 0
    %1701 = vmatpush1.bf16.msra.mxu0 0
    %1702 = vmatprep.subr.bf16.mxu0 0
    %1703 = vmatpush1.bf16.msra.mxu0 0
    %1704 = vmatprep.subr.bf16.mxu0 0
    %1705 = vmatpush1.bf16.msra.mxu0 0
    %1706 = vmatprep.subr.bf16.mxu0 0
    %1707 = vmatpush1.bf16.msra.mxu0 0
    %1708 = vmatprep.subr.bf16.mxu0 0
    %1709 = vmatpush1.bf16.msra.mxu0 0
    %1710 = vmatprep.subr.bf16.mxu0 0
    %1711 = vmatpush1.bf16.msra.mxu0 0
    %1712 = vmatprep.subr.bf16.mxu0 0
    %1713 = vmatpush1.bf16.msra.mxu0 0
    %1714 = vmatprep.subr.bf16.mxu0 0
    %1715 = vmatpush1.bf16.msra.mxu0 0
    %1716 = vmatprep.subr.bf16.mxu0 0
    %1717 = vmatpush1.bf16.msra.mxu0 0
    %1718 = vmatprep.subr.bf16.mxu0 0
    %1719 = vmatpush1.bf16.msra.mxu0 0
    %1720 = vmatprep.subr.bf16.mxu0 0
    %1721 = vmatpush1.bf16.msra.mxu0 0
    %1722 = vmatprep.subr.bf16.mxu0 0
    %1723 = vmatpush1.bf16.msra.mxu0 0
    %1724 = vmatprep.subr.bf16.mxu0 0
    %1725 = vmatpush1.bf16.msra.mxu0 0
    %1726 = vmatprep.mubr.bf16.mxu0 0
    %1727 = vmatmul.mubr.bf16.gmra.mrb[0].mxu0 %v1692
    %v1728 = vpop.f32.mrb[0].mxu0
    %v1729 = vadd.f32 %v1679, %v1728
    %v1730 = vpop.f32.mrb[0].mxu0
    %v1731 = vadd.f32 %v1679, %v1730
    %v1732 = vpop.f32.mrb[0].mxu0
    %v1733 = vadd.f32 %v1684, %v1732
    %v1734 = vpop.f32.mrb[0].mxu0
    %v1735 = vadd.f32 %v1684, %v1734
    %1736 = vdwg.mxu0
    %1737 = vmatprep.subr.bf16.mxu0 %v1661
    %1738 = vmatpush1.bf16.msra.mxu0 %v1660
    %1739 = vmatprep.subr.bf16.mxu0 %v1669
    %1740 = vmatpush1.bf16.msra.mxu0 %v1668
    %1741 = vmatprep.subr.bf16.mxu0 0
    %1742 = vmatpush1.bf16.msra.mxu0 0
    %1743 = vmatprep.subr.bf16.mxu0 0
    %1744 = vmatpush1.bf16.msra.mxu0 0
    %1745 = vmatprep.subr.bf16.mxu0 0
    %1746 = vmatpush1.bf16.msra.mxu0 0
    %1747 = vmatprep.subr.bf16.mxu0 0
    %1748 = vmatpush1.bf16.msra.mxu0 0
    %1749 = vmatprep.subr.bf16.mxu0 0
    %1750 = vmatpush1.bf16.msra.mxu0 0
    %1751 = vmatprep.subr.bf16.mxu0 0
    %1752 = vmatpush1.bf16.msra.mxu0 0
    %1753 = vmatprep.subr.bf16.mxu0 0
    %1754 = vmatpush1.bf16.msra.mxu0 0
    %1755 = vmatprep.subr.bf16.mxu0 0
    %1756 = vmatpush1.bf16.msra.mxu0 0
    %1757 = vmatprep.subr.bf16.mxu0 0
    %1758 = vmatpush1.bf16.msra.mxu0 0
    %1759 = vmatprep.subr.bf16.mxu0 0
    %1760 = vmatpush1.bf16.msra.mxu0 0
    %1761 = vmatprep.subr.bf16.mxu0 0
    %1762 = vmatpush1.bf16.msra.mxu0 0
    %1763 = vmatprep.subr.bf16.mxu0 0
    %1764 = vmatpush1.bf16.msra.mxu0 0
    %1765 = vmatprep.subr.bf16.mxu0 0
    %1766 = vmatpush1.bf16.msra.mxu0 0
    %1767 = vmatprep.subr.bf16.mxu0 0
    %1768 = vmatpush1.bf16.msra.mxu0 0
    %1769 = vmatprep.mubr.bf16.mxu0 0
    %1770 = vmatmul.mubr.bf16.gmra.mrb[0].mxu0 %v1692
    %v1771 = vpop.f32.mrb[0].mxu0
    %v1772 = vadd.f32 %v1679, %v1771
    %v1773 = vpop.f32.mrb[0].mxu0
    %v1774 = vadd.f32 %v1679, %v1773
    %v1775 = vpop.f32.mrb[0].mxu0
    %v1776 = vadd.f32 %v1684, %v1775
    %v1777 = vpop.f32.mrb[0].mxu0
    %v1778 = vadd.f32 %v1684, %v1777
    %1779 = vdwg.mxu0
    %1780 = vmatprep.subr.bf16.mxu0 %v1663
    %1781 = vmatpush1.bf16.msra.mxu0 %v1662
    %1782 = vmatprep.subr.bf16.mxu0 %v1671
    %1783 = vmatpush1.bf16.msra.mxu0 %v1670
    %1784 = vmatprep.subr.bf16.mxu0 0
    %1785 = vmatpush1.bf16.msra.mxu0 0
    %1786 = vmatprep.subr.bf16.mxu0 0
    %1787 = vmatpush1.bf16.msra.mxu0 0
    %1788 = vmatprep.subr.bf16.mxu0 0
    %1789 = vmatpush1.bf16.msra.mxu0 0
    %1790 = vmatprep.subr.bf16.mxu0 0
    %1791 = vmatpush1.bf16.msra.mxu0 0
    %1792 = vmatprep.subr.bf16.mxu0 0
    %1793 = vmatpush1.bf16.msra.mxu0 0
    %1794 = vmatprep.subr.bf16.mxu0 0
    %1795 = vmatpush1.bf16.msra.mxu0 0
    %1796 = vmatprep.subr.bf16.mxu0 0
    %1797 = vmatpush1.bf16.msra.mxu0 0
    %1798 = vmatprep.subr.bf16.mxu0 0
    %1799 = vmatpush1.bf16.msra.mxu0 0
    %1800 = vmatprep.subr.bf16.mxu0 0
    %1801 = vmatpush1.bf16.msra.mxu0 0
    %1802 = vmatprep.subr.bf16.mxu0 0
    %1803 = vmatpush1.bf16.msra.mxu0 0
    %1804 = vmatprep.subr.bf16.mxu0 0
    %1805 = vmatpush1.bf16.msra.mxu0 0
    %1806 = vmatprep.subr.bf16.mxu0 0
    %1807 = vmatpush1.bf16.msra.mxu0 0
    %1808 = vmatprep.subr.bf16.mxu0 0
    %1809 = vmatpush1.bf16.msra.mxu0 0
    %1810 = vmatprep.subr.bf16.mxu0 0
    %1811 = vmatpush1.bf16.msra.mxu0 0
    %1812 = vmatprep.mubr.bf16.mxu0 0
    %1813 = vmatmul.mubr.bf16.gmra.mrb[0].mxu0 %v1692
    %v1814 = vpop.f32.mrb[0].mxu0
    %v1815 = vadd.f32 %v1679, %v1814
    %v1816 = vpop.f32.mrb[0].mxu0
    %v1817 = vadd.f32 %v1679, %v1816
    %v1818 = vpop.f32.mrb[0].mxu0
    %v1819 = vadd.f32 %v1684, %v1818
    %v1820 = vpop.f32.mrb[0].mxu0
    %v1821 = vadd.f32 %v1684, %v1820
    %1822 = vdwg.mxu0
    %1823 = vmatprep.subr.bf16.mxu0 %v1665
    %1824 = vmatpush1.bf16.msra.mxu0 %v1664
    %1825 = vmatprep.subr.bf16.mxu0 %v1673
    %1826 = vmatpush1.bf16.msra.mxu0 %v1672
    %1827 = vmatprep.subr.bf16.mxu0 0
    %1828 = vmatpush1.bf16.msra.mxu0 0
    %1829 = vmatprep.subr.bf16.mxu0 0
    %1830 = vmatpush1.bf16.msra.mxu0 0
    %1831 = vmatprep.subr.bf16.mxu0 0
    %1832 = vmatpush1.bf16.msra.mxu0 0
    %1833 = vmatprep.subr.bf16.mxu0 0
    %1834 = vmatpush1.bf16.msra.mxu0 0
    %1835 = vmatprep.subr.bf16.mxu0 0
    %1836 = vmatpush1.bf16.msra.mxu0 0
    %1837 = vmatprep.subr.bf16.mxu0 0
    %1838 = vmatpush1.bf16.msra.mxu0 0
    %1839 = vmatprep.subr.bf16.mxu0 0
    %1840 = vmatpush1.bf16.msra.mxu0 0
    %1841 = vmatprep.subr.bf16.mxu0 0
    %1842 = vmatpush1.bf16.msra.mxu0 0
    %1843 = vmatprep.subr.bf16.mxu0 0
    %1844 = vmatpush1.bf16.msra.mxu0 0
    %1845 = vmatprep.subr.bf16.mxu0 0
    %1846 = vmatpush1.bf16.msra.mxu0 0
    %1847 = vmatprep.subr.bf16.mxu0 0
    %1848 = vmatpush1.bf16.msra.mxu0 0
    %1849 = vmatprep.subr.bf16.mxu0 0
    %1850 = vmatpush1.bf16.msra.mxu0 0
    %1851 = vmatprep.subr.bf16.mxu0 0
    %1852 = vmatpush1.bf16.msra.mxu0 0
    %1853 = vmatprep.subr.bf16.mxu0 0
    %1854 = vmatpush1.bf16.msra.mxu0 0
    %1855 = vmatprep.mubr.bf16.mxu0 0
    %1856 = vmatmul.mubr.bf16.gmra.mrb[0].mxu0 %v1692
    %v1857 = vpop.f32.mrb[0].mxu0
    %v1858 = vadd.f32 %v1679, %v1857
    %v1859 = vpop.f32.mrb[0].mxu0
    %v1860 = vadd.f32 %v1679, %v1859
    %v1861 = vpop.f32.mrb[0].mxu0
    %v1862 = vadd.f32 %v1684, %v1861
    %v1863 = vpop.f32.mrb[0].mxu0
    %v1864 = vadd.f32 %v1684, %v1863
    %1865 = vdwg.mxu0
    %v1866 = vmax.f32 %v1729, 0.0
    %v1867 = vmax.f32 %v1731, 0.0
    %v1868 = vmax.f32 %v1772, 0.0
    %v1869 = vmax.f32 %v1774, 0.0
    %v1870 = vmax.f32 %v1815, 0.0
    %v1871 = vmax.f32 %v1817, 0.0
    %v1872 = vmax.f32 %v1858, 0.0
    %v1873 = vmax.f32 %v1860, 0.0
    %v1874 = vmax.f32 %v1733, 0.0
    %v1875 = vmax.f32 %v1735, 0.0
    %v1876 = vmax.f32 %v1776, 0.0
    %v1877 = vmax.f32 %v1778, 0.0
    %v1878 = vmax.f32 %v1819, 0.0
    %v1879 = vmax.f32 %v1821, 0.0
    %v1880 = vmax.f32 %v1862, 0.0
    %v1881 = vmax.f32 %v1864, 0.0
    %v1882 = vld [vmem:[%s11] sm:$0xff]
    %v1883 = vld [vmem:[%s11 + $0x8] sm:$0xff]
    %1885 = vset.pattern.permute.xlu0 0
    %1886 = vperm.xlu0 %1885, %v1882
    %v1887 = vpop.permute.xlu0 %1886
    %1890 = vset.pattern.permute.xlu0 0
    %1891 = vperm.xlu0 %1890, %v1883
    %v1892 = vpop.permute.xlu0 %1891
    %v1894 = vmul.f32 %v1866, %v1887
    %v1895 = vmul.f32 %v1867, %v1887
    %v1896 = vmul.f32 %v1868, %v1887
    %v1897 = vmul.f32 %v1869, %v1887
    %v1898 = vmul.f32 %v1870, %v1887
    %v1899 = vmul.f32 %v1871, %v1887
    %v1900 = vmul.f32 %v1872, %v1887
    %v1901 = vmul.f32 %v1873, %v1887
    %v1902 = vmul.f32 %v1874, %v1892
    %v1903 = vmul.f32 %v1875, %v1892
    %v1904 = vmul.f32 %v1876, %v1892
    %v1905 = vmul.f32 %v1877, %v1892
    %v1906 = vmul.f32 %v1878, %v1892
    %v1907 = vmul.f32 %v1879, %v1892
    %v1908 = vmul.f32 %v1880, %v1892
    %v1909 = vmul.f32 %v1881, %v1892
    %v1910 = vadd.f32 %v1894, %v1902
    %v1911 = vrot.slane %v1910, 4
    %v1912 = vadd.f32 %v1910, %v1911
    %v1913 = vrot.slane %v1912, 2
    %v1914 = vadd.f32 %v1912, %v1913
    %v1915 = vrot.slane %v1914, 1
    %v1916 = vadd.f32 %v1914, %v1915
    %v1917 = vadd.f32 %v1895, %v1903
    %v1918 = vrot.slane %v1917, 4
    %v1919 = vadd.f32 %v1917, %v1918
    %v1920 = vrot.slane %v1919, 2
    %v1921 = vadd.f32 %v1919, %v1920
    %v1922 = vrot.slane %v1921, 1
    %v1923 = vadd.f32 %v1921, %v1922
    %v1924 = vadd.f32 %v1896, %v1904
    %v1925 = vrot.slane %v1924, 4
    %v1926 = vadd.f32 %v1924, %v1925
    %v1927 = vrot.slane %v1926, 2
    %v1928 = vadd.f32 %v1926, %v1927
    %v1929 = vrot.slane %v1928, 1
    %v1930 = vadd.f32 %v1928, %v1929
    %v1931 = vadd.f32 %v1897, %v1905
    %v1932 = vrot.slane %v1931, 4
    %v1933 = vadd.f32 %v1931, %v1932
    %v1934 = vrot.slane %v1933, 2
    %v1935 = vadd.f32 %v1933, %v1934
    %v1936 = vrot.slane %v1935, 1
    %v1937 = vadd.f32 %v1935, %v1936
    %v1938 = vadd.f32 %v1898, %v1906
    %v1939 = vrot.slane %v1938, 4
    %v1940 = vadd.f32 %v1938, %v1939
    %v1941 = vrot.slane %v1940, 2
    %v1942 = vadd.f32 %v1940, %v1941
    %v1943 = vrot.slane %v1942, 1
    %v1944 = vadd.f32 %v1942, %v1943
    %v1945 = vadd.f32 %v1899, %v1907
    %v1946 = vrot.slane %v1945, 4
    %v1947 = vadd.f32 %v1945, %v1946
    %v1948 = vrot.slane %v1947, 2
    %v1949 = vadd.f32 %v1947, %v1948
    %v1950 = vrot.slane %v1949, 1
    %v1951 = vadd.f32 %v1949, %v1950
    %v1952 = vadd.f32 %v1900, %v1908
    %v1953 = vrot.slane %v1952, 4
    %v1954 = vadd.f32 %v1952, %v1953
    %v1955 = vrot.slane %v1954, 2
    %v1956 = vadd.f32 %v1954, %v1955
    %v1957 = vrot.slane %v1956, 1
    %v1958 = vadd.f32 %v1956, %v1957
    %v1959 = vadd.f32 %v1901, %v1909
    %v1960 = vrot.slane %v1959, 4
    %v1961 = vadd.f32 %v1959, %v1960
    %v1962 = vrot.slane %v1961, 2
    %v1963 = vadd.f32 %v1961, %v1962
    %v1964 = vrot.slane %v1963, 1
    %v1965 = vadd.f32 %v1963, %v1964
    %v1966 = vld [vmem:[#allocation2] sm:$0x1]
    %1968 = vset.pattern.permute.xlu0 0
    %1969 = vperm.xlu0 %1968, %v1966
    %v1970 = vpop.permute.xlu0 %1969
    %v1972 = vlaneseq
    %v1973 = vshrl.u32 %v1972, 7
    %v1974 = vsub.s32 0, %v1973
    %v1975 = vrot.slane %v1970, %v1974
    %v1976 = vadd.f32 %v1916, %v1975
    %v1977 = vadd.f32 %v1923, %v1975
    %v1978 = vadd.f32 %v1930, %v1975
    %v1979 = vadd.f32 %v1937, %v1975
    %v1980 = vadd.f32 %v1944, %v1975
    %v1981 = vadd.f32 %v1951, %v1975
    %v1982 = vadd.f32 %v1958, %v1975
    %v1983 = vadd.f32 %v1965, %v1975
    %v1992 = vcombine.low %v1976, %v1977
    %v1993 = vcombine.low %v1978, %v1979
    %v1994 = vcombine.low %v1980, %v1981
    %v1995 = vcombine.low %v1982, %v1983
    %v1997 = vunpack.c.l.s4 1966171168
    %v1998 = vunpack.c.0.s8 %v1997
    %v1999 = vlaneseq
    %v2000 = vshrl.u32 %v1999, 7
    %v2001 = vsub.s32 %v1998, %v2000
    %v2002 = vrot.slane %v1992, %v2001
    %v2004 = vunpack.c.l.s4 1966171168
    %v2005 = vunpack.c.0.s8 %v2004
    %v2006 = vlaneseq
    %v2007 = vshrl.u32 %v2006, 7
    %v2008 = vsub.s32 %v2005, %v2007
    %v2009 = vrot.slane %v1993, %v2008
    %v2011 = vunpack.c.l.s4 1966171168
    %v2012 = vunpack.c.0.s8 %v2011
    %v2013 = vlaneseq
    %v2014 = vshrl.u32 %v2013, 7
    %v2015 = vsub.s32 %v2012, %v2014
    %v2016 = vrot.slane %v1994, %v2015
    %v2018 = vunpack.c.l.s4 1966171168
    %v2019 = vunpack.c.0.s8 %v2018
    %v2020 = vlaneseq
    %v2021 = vshrl.u32 %v2020, 7
    %v2022 = vsub.s32 %v2019, %v2021
    %v2023 = vrot.slane %v1995, %v2022
    %v2024 = vcombine.low %v2002, %v2009
    %v2025 = vcombine.low %v2016, %v2023
    %v2027 = vunpack.c.l.s4 1966171168
    %v2028 = vunpack.c.0.s8 %v2027
    %v2029 = vlaneseq
    %v2030 = vshrl.u32 %v2029, 7
    %v2031 = vsub.s32 %v2028, %v2030
    %v2032 = vrot.slane %v2024, %v2031
    %v2034 = vunpack.c.l.s4 1966171168
    %v2035 = vunpack.c.0.s8 %v2034
    %v2036 = vlaneseq
    %v2037 = vshrl.u32 %v2036, 7
    %v2038 = vsub.s32 %v2035, %v2037
    %v2039 = vrot.slane %v2025, %v2038
    %v2040 = vcombine.low %v2032, %v2039
    %2042 = vst [vmem:[#allocation6] sm:$0xff] %v2040
    // Predicated region
    $region58: #{qat_mlp_forward.1} parent=1 // pred_check
      _
    $region59: #{qat_mlp_forward.1} parent=1 // pred_check_branch
      %2044 = sbr.rel (0) target = $region61
    $region60: #{qat_mlp_forward.1} parent=1 // pred_region
      %s2046 = ssub.s32 128, 128
      %2047 = vsyncadd [#allocation5], %s2046
      %s2049 = sshll.u32 [#allocation6], 4
      %s2050 = int_to_ptr.vmem [resolvable:$true] %s2049
      %2052 = dma.vmem_to_hbm [thread:$0]  %s2050, 128, %s13, [#allocation5]
    $region61: #{qat_mlp_forward.1} parent=1 // pred_fallthru
      _
    // Predicated region
    $region62: #{qat_mlp_forward.1} parent=1 // pred_check
      _
    $region63: #{qat_mlp_forward.1} parent=1 // pred_check_branch
      %2054 = sbr.rel (0) target = $region65
    $region64: #{qat_mlp_forward.1} parent=1 // pred_region
      %2055 = dma.done [#allocation5], 128
    $region65: #{qat_mlp_forward.1} parent=1 // pred_fallthru
      _
    %2056 = vsyncpa [#allocation4], 1
    %2057 = vsyncpa [#allocation5], 1

</llo_original>
